<compile_context>
chip_gen: v5e
topology: v5e:2x2
jax: 0.10.0
libtpu: 0.0.40
codegen_flags: <defaults>
</compile_context>

<pallas_src>
import functools
import math

import jax
import jax.numpy as jnp
from jax.experimental import pallas as pl
from jax.experimental.pallas import tpu as pltpu

D_MODEL = 32
N_HEADS = 4
HEAD_DIM = D_MODEL // N_HEADS
FFN_DIM = 64
LAYER_NUM = 2
# TODO(synk): eps of the reference LayerNorm(config) is config-dependent
# (PyTorch nn.LayerNorm default is 1e-5); set to match the actual config.
LN_EPS = 1e-6
NEG_INF = -1e30

# ---- packed-slab layout ------------------------------------------------------
# 32-lane slab rows per layer: wq(32) wk(32) wv(32) wo(32) w2(64) -> lane dense.
W32_ROWS_PER_LAYER = 4 * D_MODEL + FFN_DIM            # 192
# 64-lane slab rows per layer: w1(32) + 10 small-param rows, padded to 48.
S64_ROWS_PER_LAYER = 48


def _round_up8(n):
    return ((n + 7) // 8) * 8


def _s32_layout(batch, seq, vocab_pad):
    """Row offsets inside the lane-dense 32-wide static slab (all multiples of 8)."""
    bs = batch * seq
    pos_off = 0                              # positional encoding      (bs rows)
    hm_off = pos_off + bs                    # 0/1 per-head lane mask   (NH*bs rows)
    bm_off = hm_off + N_HEADS * bs           # additive batch mask      (NH*bs rows, lanes 0:bs)
    emb_off = bm_off + N_HEADS * bs          # padded embedding table   (vocab_pad rows)
    w_off = emb_off + vocab_pad              # per-layer weight blocks
    total = w_off + LAYER_NUM * W32_ROWS_PER_LAYER
    return pos_off, hm_off, bm_off, emb_off, w_off, total


# ---- kernel ------------------------------------------------------------------
def encoder_kernel(ids_ref, s32_ref, s64_ref, o_ref, *, batch, seq, vocab_pad):
    bs = batch * seq
    nh_bs = N_HEADS * bs
    pos_off, hm_off, bm_off, emb_off, w_off, _ = _s32_layout(batch, seq, vocab_pad)

    # -- static (per-call constant) data from the 32-lane slab ---------------
    pos = s32_ref[pos_off:pos_off + bs, :]                       # (bs, D)
    head_mask = s32_ref[hm_off:hm_off + nh_bs, :]                # (NH*bs, D) 0/1
    batch_mask = s32_ref[bm_off:bm_off + nh_bs, 0:bs]            # (NH*bs, bs) additive
    emb = s32_ref[emb_off:emb_off + vocab_pad, :]                # (vocab_pad, D)

    # -- fused embedding gather (one-hot matmul) + positional encoding -------
    ids = ids_ref[...]                                           # (bs, 1) int32
    vocab_iota = jax.lax.broadcasted_iota(jnp.int32, (bs, vocab_pad), 1)
    onehot = (ids == vocab_iota).astype(jnp.float32)             # (bs, vocab_pad)
    x = jnp.dot(onehot, emb, preferred_element_type=jnp.float32) + pos   # (bs, D)

    def layer_norm(v, g, b):
        mu = jnp.mean(v, axis=-1, keepdims=True)
        var = jnp.mean((v - mu) ** 2, axis=-1, keepdims=True)
        return (v - mu) * jax.lax.rsqrt(var + LN_EPS) * g + b

    for l in range(LAYER_NUM):                                   # static unroll
        wb = w_off + l * W32_ROWS_PER_LAYER
        wq = s32_ref[wb + 0 * D_MODEL:wb + 1 * D_MODEL, :]       # pre-scaled by 1/sqrt(dh)
        wk = s32_ref[wb + 1 * D_MODEL:wb + 2 * D_MODEL, :]
        wv = s32_ref[wb + 2 * D_MODEL:wb + 3 * D_MODEL, :]
        wo = s32_ref[wb + 3 * D_MODEL:wb + 4 * D_MODEL, :]
        w2 = s32_ref[wb + 4 * D_MODEL:wb + 4 * D_MODEL + FFN_DIM, :]     # (F, D) lane dense

        pb = l * S64_ROWS_PER_LAYER
        w1 = s64_ref[pb:pb + D_MODEL, :]                         # (D, F)
        bq = s64_ref[pb + 32:pb + 33, 0:D_MODEL]                 # pre-scaled
        bk = s64_ref[pb + 33:pb + 34, 0:D_MODEL]
        bv = s64_ref[pb + 34:pb + 35, 0:D_MODEL]
        bo = s64_ref[pb + 35:pb + 36, 0:D_MODEL]
        g1 = s64_ref[pb + 36:pb + 37, 0:D_MODEL]
        beta1 = s64_ref[pb + 37:pb + 38, 0:D_MODEL]
        b1 = s64_ref[pb + 38:pb + 39, :]                         # (1, F)
        b2 = s64_ref[pb + 39:pb + 40, 0:D_MODEL]
        g2 = s64_ref[pb + 40:pb + 41, 0:D_MODEL]
        beta2 = s64_ref[pb + 41:pb + 42, 0:D_MODEL]

        # -- multi-head self-attention, all heads batched on the sublane axis -
        q = jnp.dot(x, wq, preferred_element_type=jnp.float32) + bq      # (bs, D)
        k = jnp.dot(x, wk, preferred_element_type=jnp.float32) + bk
        v = jnp.dot(x, wv, preferred_element_type=jnp.float32) + bv

        # qhat[h*bs+i, :] = q[i, :] restricted to head h's lanes (scale folded in wq).
        qhat = jnp.concatenate([q] * N_HEADS, axis=0) * head_mask        # (NH*bs, D)
        s = jnp.dot(qhat, k.T, preferred_element_type=jnp.float32)       # (NH*bs, bs)
        s = s + batch_mask                       # forbid cross-batch attention
        s = s - jnp.max(s, axis=-1, keepdims=True)
        p = jnp.exp(s)
        p = p * pl.reciprocal(jnp.sum(p, axis=-1, keepdims=True), approx=False)

        # One probs@V matmul for all heads, then mask lanes to each head and
        # fold the sublane head blocks back together (== concat-heads).
        o_all = jnp.dot(p, v, preferred_element_type=jnp.float32) * head_mask   # (NH*bs, D)
        ctx = o_all[0:bs, :]
        for h in range(1, N_HEADS):
            ctx = ctx + o_all[h * bs:(h + 1) * bs, :]                    # (bs, D)
        attn = jnp.dot(ctx, wo, preferred_element_type=jnp.float32) + bo # one wo matmul

        # -- residual + LayerNorm 1 -------------------------------------------
        src = layer_norm(attn + x, g1, beta1)

        # -- position-wise feed-forward ----------------------------------------
        hid = jnp.maximum(jnp.dot(src, w1, preferred_element_type=jnp.float32) + b1, 0.0)
        ff = jnp.dot(hid, w2, preferred_element_type=jnp.float32) + b2

        # -- residual + LayerNorm 2 --------------------------------------------
        x = layer_norm(ff + src, g2, beta2)

    o_ref[...] = x


# ---- pallas wrapper ----------------------------------------------------------
def encoder_pallas(ids, s32, s64, *, batch, seq, vocab_pad):
    bs = batch * seq
    kernel = functools.partial(encoder_kernel, batch=batch, seq=seq, vocab_pad=vocab_pad)

    flops_layer = (3 * 2 * bs * D_MODEL * D_MODEL            # q, k, v projections
                   + 2 * N_HEADS * bs * D_MODEL * bs         # scores
                   + 2 * N_HEADS * bs * bs * D_MODEL         # probs @ v
                   + 2 * bs * D_MODEL * D_MODEL              # output projection
                   + 2 * bs * D_MODEL * FFN_DIM              # ffn w1
                   + 2 * bs * FFN_DIM * D_MODEL)             # ffn w2
    flops = 2 * bs * vocab_pad * D_MODEL + LAYER_NUM * flops_layer
    transcendentals = LAYER_NUM * N_HEADS * bs * bs          # exp in softmax
    bytes_accessed = 4 * (ids.size + s32.size + s64.size + bs * D_MODEL)

    return pl.pallas_call(
        kernel,
        out_shape=jax.ShapeDtypeStruct((bs, D_MODEL), jnp.float32),
        grid=(1,),
        in_specs=[
            pl.BlockSpec(ids.shape, lambda i: (0, 0)),
            pl.BlockSpec(s32.shape, lambda i: (0, 0)),
            pl.BlockSpec(s64.shape, lambda i: (0, 0)),
        ],
        out_specs=pl.BlockSpec((bs, D_MODEL), lambda i: (0, 0)),
        compiler_params=pltpu.CompilerParams(dimension_semantics=("arbitrary",)),
        cost_estimate=pl.CostEstimate(flops=flops, transcendentals=transcendentals,
                                      bytes_accessed=bytes_accessed),
    )(ids, s32, s64)


@functools.partial(jax.jit, static_argnames=("batch", "seq", "vocab_pad"))
def encoder_forward(src_tokens, s32, s64, *, batch, seq, vocab_pad):
    """Mirrors Encoder.forward(src): returns (src_, atten_list, unify_with_universal)."""
    ids = src_tokens.reshape(batch * seq, 1).astype(jnp.int32)
    out = encoder_pallas(ids, s32, s64, batch=batch, seq=seq, vocab_pad=vocab_pad)
    out = out.reshape(batch, seq, D_MODEL)
    # Reference forward allocates np.zeros for atten_list and never fills it.
    atten_list = jnp.zeros((LAYER_NUM, batch, N_HEADS, seq, seq), jnp.float32)
    unify_with_universal = ()
    return out, atten_list, unify_with_universal


# ---- host-side packing / glue ------------------------------------------------
def positional_encoding(seq_len, d_model):
    pos = jnp.arange(seq_len, dtype=jnp.float32)[:, None]
    i = jnp.arange(d_model)[None, :]
    angle = pos / jnp.power(10000.0, (2.0 * (i // 2)) / d_model)
    return jnp.where(i % 2 == 0, jnp.sin(angle), jnp.cos(angle)).astype(jnp.float32)


def pack_static_slabs(layer_params, embedding_matrix, batch, seq):
    """Pack pos-enc, masks, embedding table and all layer weights into two
    lane-dense slabs (one 32-lane, one 64-lane). Done once at init."""
    bs = batch * seq
    vocab, d = embedding_matrix.shape
    assert d == D_MODEL
    vocab_pad = _round_up8(vocab)
    pos_off, hm_off, bm_off, emb_off, w_off, total_rows = _s32_layout(batch, seq, vocab_pad)
    scale = 1.0 / math.sqrt(HEAD_DIM)

    pos_bs = jnp.tile(positional_encoding(seq, D_MODEL), (batch, 1))         # (bs, D)

    row_head = jnp.arange(N_HEADS * bs, dtype=jnp.int32) // bs               # head of each row block
    col_head = jnp.arange(D_MODEL, dtype=jnp.int32) // HEAD_DIM              # head of each lane
    head_mask = (row_head[:, None] == col_head[None, :]).astype(jnp.float32) # (NH*bs, D)

    tok_b = jnp.arange(bs, dtype=jnp.int32) // seq
    same_b = tok_b[:, None] == tok_b[None, :]                                # (bs, bs)
    bmask = jnp.where(jnp.tile(same_b, (N_HEADS, 1)), 0.0, NEG_INF).astype(jnp.float32)

    emb_pad = jnp.zeros((vocab_pad, D_MODEL), jnp.float32).at[:vocab].set(
        embedding_matrix.astype(jnp.float32))

    s32 = jnp.zeros((total_rows, D_MODEL), jnp.float32)
    s32 = s32.at[pos_off:pos_off + bs, :].set(pos_bs)
    s32 = s32.at[hm_off:hm_off + N_HEADS * bs, :].set(head_mask)
    s32 = s32.at[bm_off:bm_off + N_HEADS * bs, 0:bs].set(bmask)
    s32 = s32.at[emb_off:emb_off + vocab_pad, :].set(emb_pad)

    s64 = jnp.zeros((LAYER_NUM * S64_ROWS_PER_LAYER, FFN_DIM), jnp.float32)

    for l, p in enumerate(layer_params):
        wb = w_off + l * W32_ROWS_PER_LAYER
        s32 = s32.at[wb + 0 * D_MODEL:wb + 1 * D_MODEL, :].set(p["wq"] * scale)
        s32 = s32.at[wb + 1 * D_MODEL:wb + 2 * D_MODEL, :].set(p["wk"])
        s32 = s32.at[wb + 2 * D_MODEL:wb + 3 * D_MODEL, :].set(p["wv"])
        s32 = s32.at[wb + 3 * D_MODEL:wb + 4 * D_MODEL, :].set(p["wo"])
        s32 = s32.at[wb + 4 * D_MODEL:wb + 4 * D_MODEL + FFN_DIM, :].set(p["w2"])

        pb = l * S64_ROWS_PER_LAYER
        s64 = s64.at[pb:pb + D_MODEL, :].set(p["w1"])

        def put32(slab, row, val):
            return slab.at[pb + row:pb + row + 1, 0:D_MODEL].set(val)

        s64 = put32(s64, 32, p["bq"] * scale)
        s64 = put32(s64, 33, p["bk"])
        s64 = put32(s64, 34, p["bv"])
        s64 = put32(s64, 35, p["bo"])
        s64 = put32(s64, 36, p["g1"])
        s64 = put32(s64, 37, p["beta1"])
        s64 = s64.at[pb + 38:pb + 39, :].set(p["b1"])
        s64 = put32(s64, 39, p["b2"])
        s64 = put32(s64, 40, p["g2"])
        s64 = put32(s64, 41, p["beta2"])

    return s32, s64, vocab_pad


def init_layer_params(key):
    ks = jax.random.split(key, 6)

    def lin(k, d_in, d_out):
        return 0.02 * jax.random.normal(k, (d_in, d_out), jnp.float32)

    return {
        "wq": lin(ks[0], D_MODEL, D_MODEL), "bq": jnp.zeros((1, D_MODEL), jnp.float32),
        "wk": lin(ks[1], D_MODEL, D_MODEL), "bk": jnp.zeros((1, D_MODEL), jnp.float32),
        "wv": lin(ks[2], D_MODEL, D_MODEL), "bv": jnp.zeros((1, D_MODEL), jnp.float32),
        "wo": lin(ks[3], D_MODEL, D_MODEL), "bo": jnp.zeros((1, D_MODEL), jnp.float32),
        "g1": jnp.ones((1, D_MODEL), jnp.float32), "beta1": jnp.zeros((1, D_MODEL), jnp.float32),
        "w1": lin(ks[4], D_MODEL, FFN_DIM), "b1": jnp.zeros((1, FFN_DIM), jnp.float32),
        "w2": lin(ks[5], FFN_DIM, D_MODEL), "b2": jnp.zeros((1, D_MODEL), jnp.float32),
        "g2": jnp.ones((1, D_MODEL), jnp.float32), "beta2": jnp.zeros((1, D_MODEL), jnp.float32),
    }


def encoder_reference(src_tokens, embedding_matrix, layer_params):
    """Pure-JAX reference (standard MHA + FFN encoder) for numerical checking."""
    B, S = src_tokens.shape
    hp = jax.lax.Precision.HIGHEST
    x = embedding_matrix[src_tokens] + positional_encoding(S, D_MODEL)[None]
    scale = 1.0 / math.sqrt(HEAD_DIM)

    def ln(v, g, b):
        mu = jnp.mean(v, -1, keepdims=True)
        var = jnp.mean((v - mu) ** 2, -1, keepdims=True)
        return (v - mu) * jax.lax.rsqrt(var + LN_EPS) * g + b

    def heads(t):
        return t.reshape(B, S, N_HEADS, HEAD_DIM).transpose(0, 2, 1, 3)

    for p in layer_params:
        q = heads(jnp.einsum("bsd,de->bse", x, p["wq"], precision=hp) + p["bq"])
        k = heads(jnp.einsum("bsd,de->bse", x, p["wk"], precision=hp) + p["bk"])
        v = heads(jnp.einsum("bsd,de->bse", x, p["wv"], precision=hp) + p["bv"])
        s = jnp.einsum("bhqd,bhkd->bhqk", q, k, precision=hp) * scale
        a = jax.nn.softmax(s, axis=-1)
        o = jnp.einsum("bhqk,bhkd->bhqd", a, v, precision=hp)
        o = o.transpose(0, 2, 1, 3).reshape(B, S, D_MODEL)
        attn = jnp.einsum("bsd,de->bse", o, p["wo"], precision=hp) + p["bo"]
        x = ln(attn + x, p["g1"], p["beta1"])
        h = jax.nn.relu(jnp.einsum("bsd,df->bsf", x, p["w1"], precision=hp) + p["b1"])
        ff = jnp.einsum("bsf,fd->bsd", h, p["w2"], precision=hp) + p["b2"]
        x = ln(ff + x, p["g2"], p["beta2"])
    return x


if __name__ == "__main__":
    key = jax.random.PRNGKey(0)
    k_emb, k_tok, k_layers = jax.random.split(key, 3)

    VOCAB, BATCH, SEQ = 50, 2, 8
    embedding_matrix = 0.1 * jax.random.normal(k_emb, (VOCAB, D_MODEL), jnp.float32)
    src_tokens = jax.random.randint(k_tok, (BATCH, SEQ), 0, VOCAB, dtype=jnp.int32)

    layer_keys = jax.random.split(k_layers, LAYER_NUM)
    layer_params = [init_layer_params(k) for k in layer_keys]

    s32, s64, vocab_pad = pack_static_slabs(layer_params, embedding_matrix, BATCH, SEQ)

    out, atten_list, unify = encoder_forward(src_tokens, s32, s64,
                                             batch=BATCH, seq=SEQ, vocab_pad=vocab_pad)
    jax.block_until_ready(out)

    ref = encoder_reference(src_tokens, embedding_matrix, layer_params)
    max_err = float(jnp.max(jnp.abs(out - ref)))

    assert out.shape == (BATCH, SEQ, D_MODEL)
    assert atten_list.shape == (LAYER_NUM, BATCH, N_HEADS, SEQ, SEQ)
    assert max_err < 1e-2, f"kernel mismatch vs pure-JAX reference: {max_err}"
    print("KERNEL_OK")
</pallas_src>

<mosaic_0001>
module attributes {stable_mosaic.version = 11 : i64} {
  func.func @encoder_kernel(%arg0: i32, %arg1: memref<16x1xi32, #tpu.memory_space<vmem>>, %arg2: memref<584x32xf32, #tpu.memory_space<vmem>>, %arg3: memref<96x64xf32, #tpu.memory_space<vmem>>, %arg4: memref<16x32xf32, #tpu.memory_space<vmem>>) attributes {dimension_semantics = [#tpu.dimension_semantics<arbitrary>], iteration_bounds = array<i64: 1>, scalar_prefetch = 0 : i64, scratch_operands = 0 : i64, tpu.core_type = #tpu.core_type<tc>, window_params = [{pipeline_mode = #tpu.pipeline_mode<synchronous>, transform_indices = @transform_0, window_bounds = array<i64: 16, 1>}, {pipeline_mode = #tpu.pipeline_mode<synchronous>, transform_indices = @transform_1, window_bounds = array<i64: 584, 32>}, {pipeline_mode = #tpu.pipeline_mode<synchronous>, transform_indices = @transform_2, window_bounds = array<i64: 96, 64>}, {pipeline_mode = #tpu.pipeline_mode<synchronous>, transform_indices = @transform_3, window_bounds = array<i64: 16, 32>}]} {
    %c0 = arith.constant 0 : index
    %c0_0 = arith.constant 0 : index
    %0 = vector.load %arg2[%c0, %c0_0] : memref<584x32xf32, #tpu.memory_space<vmem>>, vector<16x32xf32>
    %c16 = arith.constant 16 : index
    %c0_1 = arith.constant 0 : index
    %1 = vector.load %arg2[%c16, %c0_1] : memref<584x32xf32, #tpu.memory_space<vmem>>, vector<64x32xf32>
    %c80 = arith.constant 80 : index
    %c0_2 = arith.constant 0 : index
    %2 = vector.load %arg2[%c80, %c0_2] : memref<584x32xf32, #tpu.memory_space<vmem>>, vector<64x16xf32>
    %c144 = arith.constant 144 : index
    %c0_3 = arith.constant 0 : index
    %3 = vector.load %arg2[%c144, %c0_3] : memref<584x32xf32, #tpu.memory_space<vmem>>, vector<56x32xf32>
    %c0_4 = arith.constant 0 : index
    %c0_5 = arith.constant 0 : index
    %4 = vector.load %arg1[%c0_4, %c0_5] : memref<16x1xi32, #tpu.memory_space<vmem>>, vector<16x1xi32>
    %5 = tpu.iota {dimensions = array<i32: 1>} : vector<16x56xi32>
    %6 = vector.broadcast %4 : vector<16x1xi32> to vector<16x56xi32>
    %7 = arith.cmpi eq, %6, %5 : vector<16x56xi32>
    %8 = arith.extui %7 : vector<16x56xi1> to vector<16x56xi32>
    %9 = arith.sitofp %8 : vector<16x56xi32> to vector<16x56xf32>
    %cst = arith.constant dense<0.000000e+00> : vector<16x32xf32>
    %10 = tpu.matmul %9, %3, %cst {dimension_numbers = #tpu.dot_dimension_numbers<[1], [0], [0], [1], [0, 0, 1, 1], [], []>} : vector<16x56xf32>, vector<56x32xf32>, vector<16x32xf32> -> vector<16x32xf32>
    %11 = arith.addf %10, %0 : vector<16x32xf32>
    %c200 = arith.constant 200 : index
    %c0_6 = arith.constant 0 : index
    %12 = vector.load %arg2[%c200, %c0_6] : memref<584x32xf32, #tpu.memory_space<vmem>>, vector<32x32xf32>
    %c232 = arith.constant 232 : index
    %c0_7 = arith.constant 0 : index
    %13 = vector.load %arg2[%c232, %c0_7] : memref<584x32xf32, #tpu.memory_space<vmem>>, vector<32x32xf32>
    %c264 = arith.constant 264 : index
    %c0_8 = arith.constant 0 : index
    %14 = vector.load %arg2[%c264, %c0_8] : memref<584x32xf32, #tpu.memory_space<vmem>>, vector<32x32xf32>
    %c296 = arith.constant 296 : index
    %c0_9 = arith.constant 0 : index
    %15 = vector.load %arg2[%c296, %c0_9] : memref<584x32xf32, #tpu.memory_space<vmem>>, vector<32x32xf32>
    %c328 = arith.constant 328 : index
    %c0_10 = arith.constant 0 : index
    %16 = vector.load %arg2[%c328, %c0_10] : memref<584x32xf32, #tpu.memory_space<vmem>>, vector<64x32xf32>
    %c0_11 = arith.constant 0 : index
    %c0_12 = arith.constant 0 : index
    %17 = vector.load %arg3[%c0_11, %c0_12] : memref<96x64xf32, #tpu.memory_space<vmem>>, vector<32x64xf32>
    %c32 = arith.constant 32 : index
    %c0_13 = arith.constant 0 : index
    %18 = vector.load %arg3[%c32, %c0_13] : memref<96x64xf32, #tpu.memory_space<vmem>>, vector<1x32xf32>
    %c33 = arith.constant 33 : index
    %c0_14 = arith.constant 0 : index
    %19 = vector.load %arg3[%c33, %c0_14] : memref<96x64xf32, #tpu.memory_space<vmem>>, vector<1x32xf32>
    %c34 = arith.constant 34 : index
    %c0_15 = arith.constant 0 : index
    %20 = vector.load %arg3[%c34, %c0_15] : memref<96x64xf32, #tpu.memory_space<vmem>>, vector<1x32xf32>
    %c35 = arith.constant 35 : index
    %c0_16 = arith.constant 0 : index
    %21 = vector.load %arg3[%c35, %c0_16] : memref<96x64xf32, #tpu.memory_space<vmem>>, vector<1x32xf32>
    %c36 = arith.constant 36 : index
    %c0_17 = arith.constant 0 : index
    %22 = vector.load %arg3[%c36, %c0_17] : memref<96x64xf32, #tpu.memory_space<vmem>>, vector<1x32xf32>
    %c37 = arith.constant 37 : index
    %c0_18 = arith.constant 0 : index
    %23 = vector.load %arg3[%c37, %c0_18] : memref<96x64xf32, #tpu.memory_space<vmem>>, vector<1x32xf32>
    %c38 = arith.constant 38 : index
    %c0_19 = arith.constant 0 : index
    %24 = vector.load %arg3[%c38, %c0_19] : memref<96x64xf32, #tpu.memory_space<vmem>>, vector<1x64xf32>
    %c39 = arith.constant 39 : index
    %c0_20 = arith.constant 0 : index
    %25 = vector.load %arg3[%c39, %c0_20] : memref<96x64xf32, #tpu.memory_space<vmem>>, vector<1x32xf32>
    %c40 = arith.constant 40 : index
    %c0_21 = arith.constant 0 : index
    %26 = vector.load %arg3[%c40, %c0_21] : memref<96x64xf32, #tpu.memory_space<vmem>>, vector<1x32xf32>
    %c41 = arith.constant 41 : index
    %c0_22 = arith.constant 0 : index
    %27 = vector.load %arg3[%c41, %c0_22] : memref<96x64xf32, #tpu.memory_space<vmem>>, vector<1x32xf32>
    %cst_23 = arith.constant dense<0.000000e+00> : vector<16x32xf32>
    %28 = tpu.matmul %11, %12, %cst_23 {dimension_numbers = #tpu.dot_dimension_numbers<[1], [0], [0], [1], [0, 0, 1, 1], [], []>} : vector<16x32xf32>, vector<32x32xf32>, vector<16x32xf32> -> vector<16x32xf32>
    %29 = vector.broadcast %18 : vector<1x32xf32> to vector<16x32xf32>
    %30 = arith.addf %28, %29 : vector<16x32xf32>
    %cst_24 = arith.constant dense<0.000000e+00> : vector<16x32xf32>
    %31 = tpu.matmul %11, %13, %cst_24 {dimension_numbers = #tpu.dot_dimension_numbers<[1], [0], [0], [1], [0, 0, 1, 1], [], []>} : vector<16x32xf32>, vector<32x32xf32>, vector<16x32xf32> -> vector<16x32xf32>
    %32 = vector.broadcast %19 : vector<1x32xf32> to vector<16x32xf32>
    %33 = arith.addf %31, %32 : vector<16x32xf32>
    %cst_25 = arith.constant dense<0.000000e+00> : vector<16x32xf32>
    %34 = tpu.matmul %11, %14, %cst_25 {dimension_numbers = #tpu.dot_dimension_numbers<[1], [0], [0], [1], [0, 0, 1, 1], [], []>} : vector<16x32xf32>, vector<32x32xf32>, vector<16x32xf32> -> vector<16x32xf32>
    %35 = vector.broadcast %20 : vector<1x32xf32> to vector<16x32xf32>
    %36 = arith.addf %34, %35 : vector<16x32xf32>
    %37 = tpu.concatenate %30, %30, %30, %30 in 0 : vector<16x32xf32>, vector<16x32xf32>, vector<16x32xf32>, vector<16x32xf32> -> vector<64x32xf32>
    %38 = arith.mulf %37, %1 : vector<64x32xf32>
    %39 = tpu.transpose %33, [1, 0] : vector<16x32xf32> -> vector<32x16xf32>
    %cst_26 = arith.constant dense<0.000000e+00> : vector<64x16xf32>
    %40 = tpu.matmul %38, %39, %cst_26 {dimension_numbers = #tpu.dot_dimension_numbers<[1], [0], [0], [1], [0, 0, 1, 1], [], []>} : vector<64x32xf32>, vector<32x16xf32>, vector<64x16xf32> -> vector<64x16xf32>
    %41 = arith.addf %40, %2 : vector<64x16xf32>
    %cst_27 = arith.constant dense<0xFF800000> : vector<64xf32>
    %42 = vector.multi_reduction <maximumf>, %41, %cst_27 [1] : vector<64x16xf32> to vector<64xf32>
    %43 = vector.shape_cast %42 : vector<64xf32> to vector<64x1xf32>
    %44 = vector.broadcast %43 : vector<64x1xf32> to vector<64x16xf32>
    %45 = arith.subf %41, %44 : vector<64x16xf32>
    %46 = math.exp %45 : vector<64x16xf32>
    %cst_28 = arith.constant dense<0.000000e+00> : vector<64xf32>
    %47 = vector.multi_reduction <add>, %46, %cst_28 [1] : vector<64x16xf32> to vector<64xf32>
    %48 = vector.shape_cast %47 : vector<64xf32> to vector<64x1xf32>
    %49 = tpu.reciprocal %48 : vector<64x1xf32> -> vector<64x1xf32>
    %50 = vector.broadcast %49 : vector<64x1xf32> to vector<64x16xf32>
    %51 = arith.mulf %46, %50 : vector<64x16xf32>
    %cst_29 = arith.constant dense<0.000000e+00> : vector<64x32xf32>
    %52 = tpu.matmul %51, %36, %cst_29 {dimension_numbers = #tpu.dot_dimension_numbers<[1], [0], [0], [1], [0, 0, 1, 1], [], []>} : vector<64x16xf32>, vector<16x32xf32>, vector<64x32xf32> -> vector<64x32xf32>
    %53 = arith.mulf %52, %1 : vector<64x32xf32>
    %54 = vector.extract_strided_slice %53 {offsets = [0, 0], sizes = [16, 32], strides = [1, 1]} : vector<64x32xf32> to vector<16x32xf32>
    %55 = vector.extract_strided_slice %53 {offsets = [16, 0], sizes = [16, 32], strides = [1, 1]} : vector<64x32xf32> to vector<16x32xf32>
    %56 = arith.addf %54, %55 : vector<16x32xf32>
    %57 = vector.extract_strided_slice %53 {offsets = [32, 0], sizes = [16, 32], strides = [1, 1]} : vector<64x32xf32> to vector<16x32xf32>
    %58 = arith.addf %56, %57 : vector<16x32xf32>
    %59 = vector.extract_strided_slice %53 {offsets = [48, 0], sizes = [16, 32], strides = [1, 1]} : vector<64x32xf32> to vector<16x32xf32>
    %60 = arith.addf %58, %59 : vector<16x32xf32>
    %cst_30 = arith.constant dense<0.000000e+00> : vector<16x32xf32>
    %61 = tpu.matmul %60, %15, %cst_30 {dimension_numbers = #tpu.dot_dimension_numbers<[1], [0], [0], [1], [0, 0, 1, 1], [], []>} : vector<16x32xf32>, vector<32x32xf32>, vector<16x32xf32> -> vector<16x32xf32>
    %62 = vector.broadcast %21 : vector<1x32xf32> to vector<16x32xf32>
    %63 = arith.addf %61, %62 : vector<16x32xf32>
    %64 = arith.addf %63, %11 : vector<16x32xf32>
    %cst_31 = arith.constant dense<0.000000e+00> : vector<16xf32>
    %65 = vector.multi_reduction <add>, %64, %cst_31 [1] : vector<16x32xf32> to vector<16xf32>
    %66 = vector.shape_cast %65 : vector<16xf32> to vector<16x1xf32>
    %cst_32 = arith.constant 3.200000e+01 : f32
    %67 = vector.broadcast %cst_32 : f32 to vector<16x1xf32>
    %68 = arith.divf %66, %67 : vector<16x1xf32>
    %69 = vector.broadcast %68 : vector<16x1xf32> to vector<16x32xf32>
    %70 = arith.subf %64, %69 : vector<16x32xf32>
    %71 = arith.mulf %70, %70 : vector<16x32xf32>
    %cst_33 = arith.constant dense<0.000000e+00> : vector<16xf32>
    %72 = vector.multi_reduction <add>, %71, %cst_33 [1] : vector<16x32xf32> to vector<16xf32>
    %73 = vector.shape_cast %72 : vector<16xf32> to vector<16x1xf32>
    %cst_34 = arith.constant 3.200000e+01 : f32
    %74 = vector.broadcast %cst_34 : f32 to vector<16x1xf32>
    %75 = arith.divf %73, %74 : vector<16x1xf32>
    %76 = vector.broadcast %68 : vector<16x1xf32> to vector<16x32xf32>
    %77 = arith.subf %64, %76 : vector<16x32xf32>
    %cst_35 = arith.constant 9.99999997E-7 : f32
    %78 = vector.broadcast %cst_35 : f32 to vector<16x1xf32>
    %79 = arith.addf %75, %78 : vector<16x1xf32>
    %80 = math.rsqrt %79 : vector<16x1xf32>
    %81 = vector.broadcast %80 : vector<16x1xf32> to vector<16x32xf32>
    %82 = arith.mulf %77, %81 : vector<16x32xf32>
    %83 = vector.broadcast %22 : vector<1x32xf32> to vector<16x32xf32>
    %84 = arith.mulf %82, %83 : vector<16x32xf32>
    %85 = vector.broadcast %23 : vector<1x32xf32> to vector<16x32xf32>
    %86 = arith.addf %84, %85 : vector<16x32xf32>
    %cst_36 = arith.constant dense<0.000000e+00> : vector<16x64xf32>
    %87 = tpu.matmul %86, %17, %cst_36 {dimension_numbers = #tpu.dot_dimension_numbers<[1], [0], [0], [1], [0, 0, 1, 1], [], []>} : vector<16x32xf32>, vector<32x64xf32>, vector<16x64xf32> -> vector<16x64xf32>
    %88 = vector.broadcast %24 : vector<1x64xf32> to vector<16x64xf32>
    %89 = arith.addf %87, %88 : vector<16x64xf32>
    %cst_37 = arith.constant 0.000000e+00 : f32
    %90 = vector.broadcast %cst_37 : f32 to vector<16x64xf32>
    %91 = arith.maximumf %89, %90 : vector<16x64xf32>
    %cst_38 = arith.constant dense<0.000000e+00> : vector<16x32xf32>
    %92 = tpu.matmul %91, %16, %cst_38 {dimension_numbers = #tpu.dot_dimension_numbers<[1], [0], [0], [1], [0, 0, 1, 1], [], []>} : vector<16x64xf32>, vector<64x32xf32>, vector<16x32xf32> -> vector<16x32xf32>
    %93 = vector.broadcast %25 : vector<1x32xf32> to vector<16x32xf32>
    %94 = arith.addf %92, %93 : vector<16x32xf32>
    %95 = arith.addf %94, %86 : vector<16x32xf32>
    %cst_39 = arith.constant dense<0.000000e+00> : vector<16xf32>
    %96 = vector.multi_reduction <add>, %95, %cst_39 [1] : vector<16x32xf32> to vector<16xf32>
    %97 = vector.shape_cast %96 : vector<16xf32> to vector<16x1xf32>
    %cst_40 = arith.constant 3.200000e+01 : f32
    %98 = vector.broadcast %cst_40 : f32 to vector<16x1xf32>
    %99 = arith.divf %97, %98 : vector<16x1xf32>
    %100 = vector.broadcast %99 : vector<16x1xf32> to vector<16x32xf32>
    %101 = arith.subf %95, %100 : vector<16x32xf32>
    %102 = arith.mulf %101, %101 : vector<16x32xf32>
    %cst_41 = arith.constant dense<0.000000e+00> : vector<16xf32>
    %103 = vector.multi_reduction <add>, %102, %cst_41 [1] : vector<16x32xf32> to vector<16xf32>
    %104 = vector.shape_cast %103 : vector<16xf32> to vector<16x1xf32>
    %cst_42 = arith.constant 3.200000e+01 : f32
    %105 = vector.broadcast %cst_42 : f32 to vector<16x1xf32>
    %106 = arith.divf %104, %105 : vector<16x1xf32>
    %107 = vector.broadcast %99 : vector<16x1xf32> to vector<16x32xf32>
    %108 = arith.subf %95, %107 : vector<16x32xf32>
    %cst_43 = arith.constant 9.99999997E-7 : f32
    %109 = vector.broadcast %cst_43 : f32 to vector<16x1xf32>
    %110 = arith.addf %106, %109 : vector<16x1xf32>
    %111 = math.rsqrt %110 : vector<16x1xf32>
    %112 = vector.broadcast %111 : vector<16x1xf32> to vector<16x32xf32>
    %113 = arith.mulf %108, %112 : vector<16x32xf32>
    %114 = vector.broadcast %26 : vector<1x32xf32> to vector<16x32xf32>
    %115 = arith.mulf %113, %114 : vector<16x32xf32>
    %116 = vector.broadcast %27 : vector<1x32xf32> to vector<16x32xf32>
    %117 = arith.addf %115, %116 : vector<16x32xf32>
    %c392 = arith.constant 392 : index
    %c0_44 = arith.constant 0 : index
    %118 = vector.load %arg2[%c392, %c0_44] : memref<584x32xf32, #tpu.memory_space<vmem>>, vector<32x32xf32>
    %c424 = arith.constant 424 : index
    %c0_45 = arith.constant 0 : index
    %119 = vector.load %arg2[%c424, %c0_45] : memref<584x32xf32, #tpu.memory_space<vmem>>, vector<32x32xf32>
    %c456 = arith.constant 456 : index
    %c0_46 = arith.constant 0 : index
    %120 = vector.load %arg2[%c456, %c0_46] : memref<584x32xf32, #tpu.memory_space<vmem>>, vector<32x32xf32>
    %c488 = arith.constant 488 : index
    %c0_47 = arith.constant 0 : index
    %121 = vector.load %arg2[%c488, %c0_47] : memref<584x32xf32, #tpu.memory_space<vmem>>, vector<32x32xf32>
    %c520 = arith.constant 520 : index
    %c0_48 = arith.constant 0 : index
    %122 = vector.load %arg2[%c520, %c0_48] : memref<584x32xf32, #tpu.memory_space<vmem>>, vector<64x32xf32>
    %c48 = arith.constant 48 : index
    %c0_49 = arith.constant 0 : index
    %123 = vector.load %arg3[%c48, %c0_49] : memref<96x64xf32, #tpu.memory_space<vmem>>, vector<32x64xf32>
    %c80_50 = arith.constant 80 : index
    %c0_51 = arith.constant 0 : index
    %124 = vector.load %arg3[%c80_50, %c0_51] : memref<96x64xf32, #tpu.memory_space<vmem>>, vector<1x32xf32>
    %c81 = arith.constant 81 : index
    %c0_52 = arith.constant 0 : index
    %125 = vector.load %arg3[%c81, %c0_52] : memref<96x64xf32, #tpu.memory_space<vmem>>, vector<1x32xf32>
    %c82 = arith.constant 82 : index
    %c0_53 = arith.constant 0 : index
    %126 = vector.load %arg3[%c82, %c0_53] : memref<96x64xf32, #tpu.memory_space<vmem>>, vector<1x32xf32>
    %c83 = arith.constant 83 : index
    %c0_54 = arith.constant 0 : index
    %127 = vector.load %arg3[%c83, %c0_54] : memref<96x64xf32, #tpu.memory_space<vmem>>, vector<1x32xf32>
    %c84 = arith.constant 84 : index
    %c0_55 = arith.constant 0 : index
    %128 = vector.load %arg3[%c84, %c0_55] : memref<96x64xf32, #tpu.memory_space<vmem>>, vector<1x32xf32>
    %c85 = arith.constant 85 : index
    %c0_56 = arith.constant 0 : index
    %129 = vector.load %arg3[%c85, %c0_56] : memref<96x64xf32, #tpu.memory_space<vmem>>, vector<1x32xf32>
    %c86 = arith.constant 86 : index
    %c0_57 = arith.constant 0 : index
    %130 = vector.load %arg3[%c86, %c0_57] : memref<96x64xf32, #tpu.memory_space<vmem>>, vector<1x64xf32>
    %c87 = arith.constant 87 : index
    %c0_58 = arith.constant 0 : index
    %131 = vector.load %arg3[%c87, %c0_58] : memref<96x64xf32, #tpu.memory_space<vmem>>, vector<1x32xf32>
    %c88 = arith.constant 88 : index
    %c0_59 = arith.constant 0 : index
    %132 = vector.load %arg3[%c88, %c0_59] : memref<96x64xf32, #tpu.memory_space<vmem>>, vector<1x32xf32>
    %c89 = arith.constant 89 : index
    %c0_60 = arith.constant 0 : index
    %133 = vector.load %arg3[%c89, %c0_60] : memref<96x64xf32, #tpu.memory_space<vmem>>, vector<1x32xf32>
    %cst_61 = arith.constant dense<0.000000e+00> : vector<16x32xf32>
    %134 = tpu.matmul %117, %118, %cst_61 {dimension_numbers = #tpu.dot_dimension_numbers<[1], [0], [0], [1], [0, 0, 1, 1], [], []>} : vector<16x32xf32>, vector<32x32xf32>, vector<16x32xf32> -> vector<16x32xf32>
    %135 = vector.broadcast %124 : vector<1x32xf32> to vector<16x32xf32>
    %136 = arith.addf %134, %135 : vector<16x32xf32>
    %cst_62 = arith.constant dense<0.000000e+00> : vector<16x32xf32>
    %137 = tpu.matmul %117, %119, %cst_62 {dimension_numbers = #tpu.dot_dimension_numbers<[1], [0], [0], [1], [0, 0, 1, 1], [], []>} : vector<16x32xf32>, vector<32x32xf32>, vector<16x32xf32> -> vector<16x32xf32>
    %138 = vector.broadcast %125 : vector<1x32xf32> to vector<16x32xf32>
    %139 = arith.addf %137, %138 : vector<16x32xf32>
    %cst_63 = arith.constant dense<0.000000e+00> : vector<16x32xf32>
    %140 = tpu.matmul %117, %120, %cst_63 {dimension_numbers = #tpu.dot_dimension_numbers<[1], [0], [0], [1], [0, 0, 1, 1], [], []>} : vector<16x32xf32>, vector<32x32xf32>, vector<16x32xf32> -> vector<16x32xf32>
    %141 = vector.broadcast %126 : vector<1x32xf32> to vector<16x32xf32>
    %142 = arith.addf %140, %141 : vector<16x32xf32>
    %143 = tpu.concatenate %136, %136, %136, %136 in 0 : vector<16x32xf32>, vector<16x32xf32>, vector<16x32xf32>, vector<16x32xf32> -> vector<64x32xf32>
    %144 = arith.mulf %143, %1 : vector<64x32xf32>
    %145 = tpu.transpose %139, [1, 0] : vector<16x32xf32> -> vector<32x16xf32>
    %cst_64 = arith.constant dense<0.000000e+00> : vector<64x16xf32>
    %146 = tpu.matmul %144, %145, %cst_64 {dimension_numbers = #tpu.dot_dimension_numbers<[1], [0], [0], [1], [0, 0, 1, 1], [], []>} : vector<64x32xf32>, vector<32x16xf32>, vector<64x16xf32> -> vector<64x16xf32>
    %147 = arith.addf %146, %2 : vector<64x16xf32>
    %cst_65 = arith.constant dense<0xFF800000> : vector<64xf32>
    %148 = vector.multi_reduction <maximumf>, %147, %cst_65 [1] : vector<64x16xf32> to vector<64xf32>
    %149 = vector.shape_cast %148 : vector<64xf32> to vector<64x1xf32>
    %150 = vector.broadcast %149 : vector<64x1xf32> to vector<64x16xf32>
    %151 = arith.subf %147, %150 : vector<64x16xf32>
    %152 = math.exp %151 : vector<64x16xf32>
    %cst_66 = arith.constant dense<0.000000e+00> : vector<64xf32>
    %153 = vector.multi_reduction <add>, %152, %cst_66 [1] : vector<64x16xf32> to vector<64xf32>
    %154 = vector.shape_cast %153 : vector<64xf32> to vector<64x1xf32>
    %155 = tpu.reciprocal %154 : vector<64x1xf32> -> vector<64x1xf32>
    %156 = vector.broadcast %155 : vector<64x1xf32> to vector<64x16xf32>
    %157 = arith.mulf %152, %156 : vector<64x16xf32>
    %cst_67 = arith.constant dense<0.000000e+00> : vector<64x32xf32>
    %158 = tpu.matmul %157, %142, %cst_67 {dimension_numbers = #tpu.dot_dimension_numbers<[1], [0], [0], [1], [0, 0, 1, 1], [], []>} : vector<64x16xf32>, vector<16x32xf32>, vector<64x32xf32> -> vector<64x32xf32>
    %159 = arith.mulf %158, %1 : vector<64x32xf32>
    %160 = vector.extract_strided_slice %159 {offsets = [0, 0], sizes = [16, 32], strides = [1, 1]} : vector<64x32xf32> to vector<16x32xf32>
    %161 = vector.extract_strided_slice %159 {offsets = [16, 0], sizes = [16, 32], strides = [1, 1]} : vector<64x32xf32> to vector<16x32xf32>
    %162 = arith.addf %160, %161 : vector<16x32xf32>
    %163 = vector.extract_strided_slice %159 {offsets = [32, 0], sizes = [16, 32], strides = [1, 1]} : vector<64x32xf32> to vector<16x32xf32>
    %164 = arith.addf %162, %163 : vector<16x32xf32>
    %165 = vector.extract_strided_slice %159 {offsets = [48, 0], sizes = [16, 32], strides = [1, 1]} : vector<64x32xf32> to vector<16x32xf32>
    %166 = arith.addf %164, %165 : vector<16x32xf32>
    %cst_68 = arith.constant dense<0.000000e+00> : vector<16x32xf32>
    %167 = tpu.matmul %166, %121, %cst_68 {dimension_numbers = #tpu.dot_dimension_numbers<[1], [0], [0], [1], [0, 0, 1, 1], [], []>} : vector<16x32xf32>, vector<32x32xf32>, vector<16x32xf32> -> vector<16x32xf32>
    %168 = vector.broadcast %127 : vector<1x32xf32> to vector<16x32xf32>
    %169 = arith.addf %167, %168 : vector<16x32xf32>
    %170 = arith.addf %169, %117 : vector<16x32xf32>
    %cst_69 = arith.constant dense<0.000000e+00> : vector<16xf32>
    %171 = vector.multi_reduction <add>, %170, %cst_69 [1] : vector<16x32xf32> to vector<16xf32>
    %172 = vector.shape_cast %171 : vector<16xf32> to vector<16x1xf32>
    %cst_70 = arith.constant 3.200000e+01 : f32
    %173 = vector.broadcast %cst_70 : f32 to vector<16x1xf32>
    %174 = arith.divf %172, %173 : vector<16x1xf32>
    %175 = vector.broadcast %174 : vector<16x1xf32> to vector<16x32xf32>
    %176 = arith.subf %170, %175 : vector<16x32xf32>
    %177 = arith.mulf %176, %176 : vector<16x32xf32>
    %cst_71 = arith.constant dense<0.000000e+00> : vector<16xf32>
    %178 = vector.multi_reduction <add>, %177, %cst_71 [1] : vector<16x32xf32> to vector<16xf32>
    %179 = vector.shape_cast %178 : vector<16xf32> to vector<16x1xf32>
    %cst_72 = arith.constant 3.200000e+01 : f32
    %180 = vector.broadcast %cst_72 : f32 to vector<16x1xf32>
    %181 = arith.divf %179, %180 : vector<16x1xf32>
    %182 = vector.broadcast %174 : vector<16x1xf32> to vector<16x32xf32>
    %183 = arith.subf %170, %182 : vector<16x32xf32>
    %cst_73 = arith.constant 9.99999997E-7 : f32
    %184 = vector.broadcast %cst_73 : f32 to vector<16x1xf32>
    %185 = arith.addf %181, %184 : vector<16x1xf32>
    %186 = math.rsqrt %185 : vector<16x1xf32>
    %187 = vector.broadcast %186 : vector<16x1xf32> to vector<16x32xf32>
    %188 = arith.mulf %183, %187 : vector<16x32xf32>
    %189 = vector.broadcast %128 : vector<1x32xf32> to vector<16x32xf32>
    %190 = arith.mulf %188, %189 : vector<16x32xf32>
    %191 = vector.broadcast %129 : vector<1x32xf32> to vector<16x32xf32>
    %192 = arith.addf %190, %191 : vector<16x32xf32>
    %cst_74 = arith.constant dense<0.000000e+00> : vector<16x64xf32>
    %193 = tpu.matmul %192, %123, %cst_74 {dimension_numbers = #tpu.dot_dimension_numbers<[1], [0], [0], [1], [0, 0, 1, 1], [], []>} : vector<16x32xf32>, vector<32x64xf32>, vector<16x64xf32> -> vector<16x64xf32>
    %194 = vector.broadcast %130 : vector<1x64xf32> to vector<16x64xf32>
    %195 = arith.addf %193, %194 : vector<16x64xf32>
    %cst_75 = arith.constant 0.000000e+00 : f32
    %196 = vector.broadcast %cst_75 : f32 to vector<16x64xf32>
    %197 = arith.maximumf %195, %196 : vector<16x64xf32>
    %cst_76 = arith.constant dense<0.000000e+00> : vector<16x32xf32>
    %198 = tpu.matmul %197, %122, %cst_76 {dimension_numbers = #tpu.dot_dimension_numbers<[1], [0], [0], [1], [0, 0, 1, 1], [], []>} : vector<16x64xf32>, vector<64x32xf32>, vector<16x32xf32> -> vector<16x32xf32>
    %199 = vector.broadcast %131 : vector<1x32xf32> to vector<16x32xf32>
    %200 = arith.addf %198, %199 : vector<16x32xf32>
    %201 = arith.addf %200, %192 : vector<16x32xf32>
    %cst_77 = arith.constant dense<0.000000e+00> : vector<16xf32>
    %202 = vector.multi_reduction <add>, %201, %cst_77 [1] : vector<16x32xf32> to vector<16xf32>
    %203 = vector.shape_cast %202 : vector<16xf32> to vector<16x1xf32>
    %cst_78 = arith.constant 3.200000e+01 : f32
    %204 = vector.broadcast %cst_78 : f32 to vector<16x1xf32>
    %205 = arith.divf %203, %204 : vector<16x1xf32>
    %206 = vector.broadcast %205 : vector<16x1xf32> to vector<16x32xf32>
    %207 = arith.subf %201, %206 : vector<16x32xf32>
    %208 = arith.mulf %207, %207 : vector<16x32xf32>
    %cst_79 = arith.constant dense<0.000000e+00> : vector<16xf32>
    %209 = vector.multi_reduction <add>, %208, %cst_79 [1] : vector<16x32xf32> to vector<16xf32>
    %210 = vector.shape_cast %209 : vector<16xf32> to vector<16x1xf32>
    %cst_80 = arith.constant 3.200000e+01 : f32
    %211 = vector.broadcast %cst_80 : f32 to vector<16x1xf32>
    %212 = arith.divf %210, %211 : vector<16x1xf32>
    %213 = vector.broadcast %205 : vector<16x1xf32> to vector<16x32xf32>
    %214 = arith.subf %201, %213 : vector<16x32xf32>
    %cst_81 = arith.constant 9.99999997E-7 : f32
    %215 = vector.broadcast %cst_81 : f32 to vector<16x1xf32>
    %216 = arith.addf %212, %215 : vector<16x1xf32>
    %217 = math.rsqrt %216 : vector<16x1xf32>
    %218 = vector.broadcast %217 : vector<16x1xf32> to vector<16x32xf32>
    %219 = arith.mulf %214, %218 : vector<16x32xf32>
    %220 = vector.broadcast %132 : vector<1x32xf32> to vector<16x32xf32>
    %221 = arith.mulf %219, %220 : vector<16x32xf32>
    %222 = vector.broadcast %133 : vector<1x32xf32> to vector<16x32xf32>
    %223 = arith.addf %221, %222 : vector<16x32xf32>
    %c0_82 = arith.constant 0 : index
    %c0_83 = arith.constant 0 : index
    %224 = vector.load %arg4[%c0_82, %c0_83] : memref<16x32xf32, #tpu.memory_space<vmem>>, vector<16x32xf32>
    tpu.vector_store %arg4[%c0_82, %c0_83], %223 {strides = array<i32>} : memref<16x32xf32, #tpu.memory_space<vmem>>, vector<16x32xf32>,
    return
  }
  func.func @transform_0(%arg0: i32) -> (i32, i32) {
    %c0_i32 = arith.constant 0 : i32
    %c0_i32_0 = arith.constant 0 : i32
    %c0_i32_1 = arith.constant 0 : i32
    return %c0_i32, %c0_i32_0 : i32, i32
  }
  func.func @transform_1(%arg0: i32) -> (i32, i32) {
    %c0_i32 = arith.constant 0 : i32
    %c0_i32_0 = arith.constant 0 : i32
    %c0_i32_1 = arith.constant 0 : i32
    return %c0_i32, %c0_i32_0 : i32, i32
  }
  func.func @transform_2(%arg0: i32) -> (i32, i32) {
    %c0_i32 = arith.constant 0 : i32
    %c0_i32_0 = arith.constant 0 : i32
    %c0_i32_1 = arith.constant 0 : i32
    return %c0_i32, %c0_i32_0 : i32, i32
  }
  func.func @transform_3(%arg0: i32) -> (i32, i32) {
    %c0_i32 = arith.constant 0 : i32
    %c0_i32_0 = arith.constant 0 : i32
    %c0_i32_1 = arith.constant 0 : i32
    return %c0_i32, %c0_i32_0 : i32, i32
  }
}

</mosaic_0001>

<llo_original>
// kernel: encoder_forward.1
$region0: #{encoder_forward.1}
  #allocation0 [shape = 'u32[]', space=smem, size = 0x4, offset = 0x4, fixed_abs, tag = 'smem constant byte address 0x4 - core index']
  #allocation1 [shape = 'u32[72,128]{1,0:T(1,128)}', space=vmem, size = 0x9000, scoped, tag = 'internal scratch']
  %s0 = inlined_call_operand.vmem [shape: s32[16,1], index: 0, kind: input, shape index: {}]
  %s1 = inlined_call_operand.vmem [shape: f32[584,32], index: 1, kind: input, shape index: {}]
  %s2 = inlined_call_operand.vmem [shape: f32[96,64], index: 2, kind: input, shape index: {}]
  %s3 = inlined_call_operand.hbm [shape: f32[16,32], index: 3, kind: output, shape index: {}]
  %s4 = sld [smem:[#allocation0]]
  $region22: #{encoder_forward.1} parent=0
    _
  %s6 = ssub.s32 1, %s4
  %s7 = scalar_select 0, %s6, %s4
  $region1: #{encoder_forward.1} parent=0
    #allocation2 [shape = 'u8[8192]{0}', space=vmem, size = 0x2000, scoped, tag = 'output window, operand 0, single buffered']
    #allocation3 [shape = 's32[1]{0}', space=sflag, size = 0x4, scoped, tag = 'scoped memory for encoder_forward.1']
    %8 = vsyncpa [#allocation3], 0
    // Predicated region
    $region2: #{encoder_forward.1} parent=1 // pred_check
      _
    $region3: #{encoder_forward.1} parent=1 // pred_check_branch
      %10 = sbr.rel (0) target = $region5
    $region4: #{encoder_forward.1} parent=1 // pred_region
      _
    $region5: #{encoder_forward.1} parent=1 // pred_fallthru
      _
    // Predicated region
    $region6: #{encoder_forward.1} parent=1 // pred_check
      _
    $region7: #{encoder_forward.1} parent=1 // pred_check_branch
      %12 = sbr.rel (0) target = $region9
    $region8: #{encoder_forward.1} parent=1 // pred_region
      _
    $region9: #{encoder_forward.1} parent=1 // pred_fallthru
      _
    // Predicated region
    $region10: #{encoder_forward.1} parent=1 // pred_check
      _
    $region11: #{encoder_forward.1} parent=1 // pred_check_branch
      %14 = sbr.rel (0) target = $region13
    $region12: #{encoder_forward.1} parent=1 // pred_region
      _
    $region13: #{encoder_forward.1} parent=1 // pred_fallthru
      _
    %v15 = vld [vmem:[%s1] sm:$0xff]
    %v16 = vld [vmem:[%s1 + $0x8] sm:$0xff]
    %v17 = vld [vmem:[%s1 + $0x10] sm:$0xff]
    %v18 = vld [vmem:[%s1 + $0x18] sm:$0xff]
    %v19 = vld [vmem:[%s1 + $0x20] sm:$0xff]
    %v20 = vld [vmem:[%s1 + $0x28] sm:$0xff]
    %v21 = vld [vmem:[%s1 + $0x30] sm:$0xff]
    %v22 = vld [vmem:[%s1 + $0x38] sm:$0xff]
    %v23 = vld [vmem:[%s1 + $0x40] sm:$0xff]
    %v24 = vld [vmem:[%s1 + $0x48] sm:$0xff]
    %v25 = vld [vmem:[%s1 + $0x50] sm:$0xff]
    %v26 = vld [vmem:[%s1 + $0x58] sm:$0xff]
    %v27 = vld [vmem:[%s1 + $0x60] sm:$0xff]
    %v28 = vld [vmem:[%s1 + $0x68] sm:$0xff]
    %v29 = vld [vmem:[%s1 + $0x70] sm:$0xff]
    %v30 = vld [vmem:[%s1 + $0x78] sm:$0xff]
    %v31 = vld [vmem:[%s1 + $0x80] sm:$0xff]
    %v32 = vld [vmem:[%s1 + $0x88] sm:$0xff]
    %v33 = vld [vmem:[%s1 + $0x90] sm:$0xff]
    %v34 = vld [vmem:[%s1 + $0x98] sm:$0xff]
    %v35 = vld [vmem:[%s1 + $0xa0] sm:$0xff]
    %v36 = vld [vmem:[%s1 + $0xa8] sm:$0xff]
    %v37 = vld [vmem:[%s1 + $0xb0] sm:$0xff]
    %v38 = vld [vmem:[%s1 + $0xb8] sm:$0xff]
    %v39 = vld [vmem:[%s1 + $0xc0] sm:$0xff]
    %v40 = vld [vmem:[%s0] sm:$0xff]
    %v41 = vld [vmem:[%s0 + $0x8] sm:$0xff]
    %v42 = vlaneseq
    %v43 = vand.u32 %v42, 127
    %44 = vset.pattern.permute.xlu0 0
    %45 = vperm.xlu0 %44, %v40
    %v46 = vpop.permute.xlu0 %45
    %47 = vset.pattern.permute.xlu0 0
    %48 = vperm.xlu0 %47, %v41
    %v49 = vpop.permute.xlu0 %48
    %vm50 = vcmp.eq.s32.totalorder %v46, %v43
    %vm51 = vcmp.eq.s32.totalorder %v49, %v43
    %v52 = vsel %vm50, 1, 0
    %v53 = vsel %vm51, 1, 0
    %v54 = vcvt.s32.f32 %v52
    %v55 = vcvt.s32.f32 %v53
    %vm56 = vcmask 457728
    %v58 = vsel %vm56, %v54, 0
    %v61 = vsel %vm56, %v55, 0
    %63 = vmatpush.msra.mxu0 0.0
    %64 = vmatpush.msra.mxu0 0.0
    %65 = vmatpush.msra.mxu0 0.0
    %66 = vmatpush.msra.mxu0 0.0
    %67 = vmatpush.msra.mxu0 0.0
    %68 = vmatpush.msra.mxu0 0.0
    %69 = vmatpush.msra.mxu0 0.0
    %70 = vmatpush.msra.mxu0 0.0
    %71 = vmatpush.msra.mxu0 0.0
    %72 = vmatpush.msra.mxu0 %v39
    %73 = vmatpush.msra.mxu0 %v38
    %74 = vmatpush.msra.mxu0 %v37
    %75 = vmatpush.msra.mxu0 %v36
    %76 = vmatpush.msra.mxu0 %v35
    %77 = vmatpush.msra.mxu0 %v34
    %78 = vmatpush.msra.mxu0 %v33
    %79 = vmatmul.f32.gmra.mxu0 %v58
    %v80 = vpop.f32.mrf.mxu0
    %v81 = vadd.f32 %v15, %v80
    %82 = vmatmul.f32.gmra.mxu0 %v61
    %v83 = vpop.f32.mrf.mxu0
    %v84 = vadd.f32 %v16, %v83
    %85 = vdwg.mxu0
    %v86 = vld [vmem:[%s1 + $0xc8] sm:$0xff]
    %v87 = vld [vmem:[%s1 + $0xd0] sm:$0xff]
    %v88 = vld [vmem:[%s1 + $0xd8] sm:$0xff]
    %v89 = vld [vmem:[%s1 + $0xe0] sm:$0xff]
    %v90 = vld [vmem:[%s1 + $0xe8] sm:$0xff]
    %v91 = vld [vmem:[%s1 + $0xf0] sm:$0xff]
    %v92 = vld [vmem:[%s1 + $0xf8] sm:$0xff]
    %v93 = vld [vmem:[%s1 + $0x100] sm:$0xff]
    %v94 = vld [vmem:[%s1 + $0x108] sm:$0xff]
    %v95 = vld [vmem:[%s1 + $0x110] sm:$0xff]
    %v96 = vld [vmem:[%s1 + $0x118] sm:$0xff]
    %v97 = vld [vmem:[%s1 + $0x120] sm:$0xff]
    %v98 = vld [vmem:[%s1 + $0x128] sm:$0xff]
    %v99 = vld [vmem:[%s1 + $0x130] sm:$0xff]
    %v100 = vld [vmem:[%s1 + $0x138] sm:$0xff]
    %v101 = vld [vmem:[%s1 + $0x140] sm:$0xff]
    %v102 = vld [vmem:[%s1 + $0x148] sm:$0xff]
    %v103 = vld [vmem:[%s1 + $0x150] sm:$0xff]
    %v104 = vld [vmem:[%s1 + $0x158] sm:$0xff]
    %v105 = vld [vmem:[%s1 + $0x160] sm:$0xff]
    %v106 = vld [vmem:[%s1 + $0x168] sm:$0xff]
    %v107 = vld [vmem:[%s1 + $0x170] sm:$0xff]
    %v108 = vld [vmem:[%s1 + $0x178] sm:$0xff]
    %v109 = vld [vmem:[%s1 + $0x180] sm:$0xff]
    %v110 = vld [vmem:[%s2] sm:$0xff]
    %v111 = vld [vmem:[%s2 + $0x8] sm:$0xff]
    %v112 = vld [vmem:[%s2 + $0x10] sm:$0xff]
    %v113 = vld [vmem:[%s2 + $0x18] sm:$0xff]
    %v114 = vld [vmem:[%s2 + $0x20] sm:$0x1]
    %v115 = vld [vmem:[%s2 + $0x21] sm:$0x1]
    %v116 = vld [vmem:[%s2 + $0x22] sm:$0x1]
    %v117 = vld [vmem:[%s2 + $0x23] sm:$0x1]
    %v118 = vld [vmem:[%s2 + $0x24] sm:$0x1]
    %v119 = vld [vmem:[%s2 + $0x25] sm:$0x1]
    %v120 = vld [vmem:[%s2 + $0x26] sm:$0x1]
    %v121 = vld [vmem:[%s2 + $0x27] sm:$0x1]
    %v122 = vld [vmem:[%s2 + $0x28] sm:$0x1]
    %v123 = vld [vmem:[%s2 + $0x29] sm:$0x1]
    %v124 = vperm.slane %v114, 0
    %vm125 = vcmask 261120
    %v127 = vsel %vm125, %v81, 0
    %v130 = vsel %vm125, %v84, 0
    %132 = vmatpush.msra.mxu0 0.0
    %133 = vmatpush.msra.mxu0 0.0
    %134 = vmatpush.msra.mxu0 0.0
    %135 = vmatpush.msra.mxu0 0.0
    %136 = vmatpush.msra.mxu0 0.0
    %137 = vmatpush.msra.mxu0 0.0
    %138 = vmatpush.msra.mxu0 0.0
    %139 = vmatpush.msra.mxu0 0.0
    %140 = vmatpush.msra.mxu0 0.0
    %141 = vmatpush.msra.mxu0 0.0
    %142 = vmatpush.msra.mxu0 0.0
    %143 = vmatpush.msra.mxu0 0.0
    %144 = vmatpush.msra.mxu0 %v89
    %145 = vmatpush.msra.mxu0 %v88
    %146 = vmatpush.msra.mxu0 %v87
    %147 = vmatpush.msra.mxu0 %v86
    %148 = vmatmul.f32.gmra.mxu0 %v127
    %v149 = vpop.f32.mrf.mxu0
    %v150 = vadd.f32 %v124, %v149
    %151 = vmatmul.f32.gmra.mxu0 %v130
    %v152 = vpop.f32.mrf.mxu0
    %v153 = vadd.f32 %v124, %v152
    %154 = vdwg.mxu0
    %v155 = vperm.slane %v115, 0
    %156 = vmatpush.msra.mxu0 0.0
    %157 = vmatpush.msra.mxu0 0.0
    %158 = vmatpush.msra.mxu0 0.0
    %159 = vmatpush.msra.mxu0 0.0
    %160 = vmatpush.msra.mxu0 0.0
    %161 = vmatpush.msra.mxu0 0.0
    %162 = vmatpush.msra.mxu0 0.0
    %163 = vmatpush.msra.mxu0 0.0
    %164 = vmatpush.msra.mxu0 0.0
    %165 = vmatpush.msra.mxu0 0.0
    %166 = vmatpush.msra.mxu0 0.0
    %167 = vmatpush.msra.mxu0 0.0
    %168 = vmatpush.msra.mxu0 %v93
    %169 = vmatpush.msra.mxu0 %v92
    %170 = vmatpush.msra.mxu0 %v91
    %171 = vmatpush.msra.mxu0 %v90
    %172 = vmatmul.f32.gmra.mxu0 %v127
    %v173 = vpop.f32.mrf.mxu0
    %v174 = vadd.f32 %v155, %v173
    %175 = vmatmul.f32.gmra.mxu0 %v130
    %v176 = vpop.f32.mrf.mxu0
    %v177 = vadd.f32 %v155, %v176
    %178 = vdwg.mxu0
    %v179 = vperm.slane %v116, 0
    %180 = vmatpush.msra.mxu0 0.0
    %181 = vmatpush.msra.mxu0 0.0
    %182 = vmatpush.msra.mxu0 0.0
    %183 = vmatpush.msra.mxu0 0.0
    %184 = vmatpush.msra.mxu0 0.0
    %185 = vmatpush.msra.mxu0 0.0
    %186 = vmatpush.msra.mxu0 0.0
    %187 = vmatpush.msra.mxu0 0.0
    %188 = vmatpush.msra.mxu0 0.0
    %189 = vmatpush.msra.mxu0 0.0
    %190 = vmatpush.msra.mxu0 0.0
    %191 = vmatpush.msra.mxu0 0.0
    %192 = vmatpush.msra.mxu0 %v97
    %193 = vmatpush.msra.mxu0 %v96
    %194 = vmatpush.msra.mxu0 %v95
    %195 = vmatpush.msra.mxu0 %v94
    %196 = vmatmul.f32.gmra.mxu0 %v127
    %v197 = vpop.f32.mrf.mxu0
    %v198 = vadd.f32 %v179, %v197
    %199 = vmatmul.f32.gmra.mxu0 %v130
    %v200 = vpop.f32.mrf.mxu0
    %v201 = vadd.f32 %v179, %v200
    %202 = vdwg.mxu0
    %v203 = vmul.f32 %v150, %v17
    %v204 = vmul.f32 %v153, %v18
    %v205 = vmul.f32 %v150, %v19
    %v206 = vmul.f32 %v153, %v20
    %v207 = vmul.f32 %v150, %v21
    %v208 = vmul.f32 %v153, %v22
    %v209 = vmul.f32 %v150, %v23
    %v210 = vmul.f32 %v153, %v24
    %v212 = vsel %vm125, %v203, 0
    %v215 = vsel %vm125, %v204, 0
    %v218 = vsel %vm125, %v205, 0
    %v221 = vsel %vm125, %v206, 0
    %v224 = vsel %vm125, %v207, 0
    %v227 = vsel %vm125, %v208, 0
    %v230 = vsel %vm125, %v209, 0
    %v233 = vsel %vm125, %v210, 0
    %v236 = vsel %vm125, %v174, 0
    %v239 = vsel %vm125, %v177, 0
    %241 = vmatpush.xpose.msra.mxu0 0.0
    %242 = vmatpush.xpose.msra.mxu0 0.0
    %243 = vmatpush.xpose.msra.mxu0 0.0
    %244 = vmatpush.xpose.msra.mxu0 0.0
    %245 = vmatpush.xpose.msra.mxu0 0.0
    %246 = vmatpush.xpose.msra.mxu0 0.0
    %247 = vmatpush.xpose.msra.mxu0 0.0
    %248 = vmatpush.xpose.msra.mxu0 0.0
    %249 = vmatpush.xpose.msra.mxu0 0.0
    %250 = vmatpush.xpose.msra.mxu0 0.0
    %251 = vmatpush.xpose.msra.mxu0 0.0
    %252 = vmatpush.xpose.msra.mxu0 0.0
    %253 = vmatpush.xpose.msra.mxu0 0.0
    %254 = vmatpush.xpose.msra.mxu0 0.0
    %255 = vmatpush.xpose.msra.mxu0 %v239
    %256 = vmatpush.xpose.msra.mxu0 %v236
    %257 = vmatmul.f32.gmra.mxu0 %v212
    %v258 = vpop.f32.mrf.mxu0
    %v259 = vadd.f32 %v25, %v258
    %260 = vmatmul.f32.gmra.mxu0 %v215
    %v261 = vpop.f32.mrf.mxu0
    %v262 = vadd.f32 %v26, %v261
    %263 = vmatmul.f32.gmra.mxu0 %v218
    %v264 = vpop.f32.mrf.mxu0
    %v265 = vadd.f32 %v27, %v264
    %266 = vmatmul.f32.gmra.mxu0 %v221
    %v267 = vpop.f32.mrf.mxu0
    %v268 = vadd.f32 %v28, %v267
    %269 = vmatmul.f32.gmra.mxu0 %v224
    %v270 = vpop.f32.mrf.mxu0
    %v271 = vadd.f32 %v29, %v270
    %272 = vmatmul.f32.gmra.mxu0 %v227
    %v273 = vpop.f32.mrf.mxu0
    %v274 = vadd.f32 %v30, %v273
    %275 = vmatmul.f32.gmra.mxu0 %v230
    %v276 = vpop.f32.mrf.mxu0
    %v277 = vadd.f32 %v31, %v276
    %278 = vmatmul.f32.gmra.mxu0 %v233
    %v279 = vpop.f32.mrf.mxu0
    %v280 = vadd.f32 %v32, %v279
    %281 = vdwg.mxu0
    %vm282 = vcmask 130048
    %v283 = vsel %vm282, %v259, -inf
    %284 = vmax.xlane.f32.xlu0 %v283
    %v285 = vpop.xlane.xlu0 %284
    %v286 = vsel %vm282, %v262, -inf
    %287 = vmax.xlane.f32.xlu0 %v286
    %v288 = vpop.xlane.xlu0 %287
    %v289 = vsel %vm282, %v265, -inf
    %290 = vmax.xlane.f32.xlu0 %v289
    %v291 = vpop.xlane.xlu0 %290
    %v292 = vsel %vm282, %v268, -inf
    %293 = vmax.xlane.f32.xlu0 %v292
    %v294 = vpop.xlane.xlu0 %293
    %v295 = vsel %vm282, %v271, -inf
    %296 = vmax.xlane.f32.xlu0 %v295
    %v297 = vpop.xlane.xlu0 %296
    %v298 = vsel %vm282, %v274, -inf
    %299 = vmax.xlane.f32.xlu0 %v298
    %v300 = vpop.xlane.xlu0 %299
    %v301 = vsel %vm282, %v277, -inf
    %302 = vmax.xlane.f32.xlu0 %v301
    %v303 = vpop.xlane.xlu0 %302
    %v304 = vsel %vm282, %v280, -inf
    %305 = vmax.xlane.f32.xlu0 %v304
    %v306 = vpop.xlane.xlu0 %305
    %v307 = vsub.f32 %v259, %v285
    %v308 = vsub.f32 %v262, %v288
    %v309 = vsub.f32 %v265, %v291
    %v310 = vsub.f32 %v268, %v294
    %v311 = vsub.f32 %v271, %v297
    %v312 = vsub.f32 %v274, %v300
    %v313 = vsub.f32 %v277, %v303
    %v314 = vsub.f32 %v280, %v306
    %v315 = vmul.f32 %v307, 1.442695
    %v316 = vpow.pop %v315
    %v317 = vmul.f32 %v308, 1.442695
    %v318 = vpow.pop %v317
    %v319 = vmul.f32 %v309, 1.442695
    %v320 = vpow.pop %v319
    %v321 = vmul.f32 %v310, 1.442695
    %v322 = vpow.pop %v321
    %v323 = vmul.f32 %v311, 1.442695
    %v324 = vpow.pop %v323
    %v325 = vmul.f32 %v312, 1.442695
    %v326 = vpow.pop %v325
    %v327 = vmul.f32 %v313, 1.442695
    %v328 = vpow.pop %v327
    %v329 = vmul.f32 %v314, 1.442695
    %v330 = vpow.pop %v329
    %v331 = vsel %vm282, %v316, 0.0
    %332 = vadd.xlane.f32.xlu0 %v331
    %v333 = vpop.xlane.xlu0 %332
    %v334 = vsel %vm282, %v318, 0.0
    %335 = vadd.xlane.f32.xlu0 %v334
    %v336 = vpop.xlane.xlu0 %335
    %v337 = vsel %vm282, %v320, 0.0
    %338 = vadd.xlane.f32.xlu0 %v337
    %v339 = vpop.xlane.xlu0 %338
    %v340 = vsel %vm282, %v322, 0.0
    %341 = vadd.xlane.f32.xlu0 %v340
    %v342 = vpop.xlane.xlu0 %341
    %v343 = vsel %vm282, %v324, 0.0
    %344 = vadd.xlane.f32.xlu0 %v343
    %v345 = vpop.xlane.xlu0 %344
    %v346 = vsel %vm282, %v326, 0.0
    %347 = vadd.xlane.f32.xlu0 %v346
    %v348 = vpop.xlane.xlu0 %347
    %v349 = vsel %vm282, %v328, 0.0
    %350 = vadd.xlane.f32.xlu0 %v349
    %v351 = vpop.xlane.xlu0 %350
    %v352 = vsel %vm282, %v330, 0.0
    %353 = vadd.xlane.f32.xlu0 %v352
    %v354 = vpop.xlane.xlu0 %353
    %v355 = vrcp.pop %v333
    %v356 = vmul.f32 %v333, %v355
    %v357 = vsub.f32 1.0, %v356
    %v358 = vmul.f32 %v355, %v357
    %v359 = vadd.f32 %v355, %v358
    %vm360 = vweird.f32 %v333
    %vm361 = vweird.f32 %v355
    %vm362 = vmor %vm360, %vm361
    %v363 = vsel %vm362, %v355, %v359
    %v364 = vand.u32 2147483647, %v333
    %vm365 = vcmp.eq.f32.partialorder %v364, 8.507059e+37
    %v366 = vand.u32 %v333, 2147483648
    %v367 = vor.u32 1.1754944e-38, %v366
    %v368 = vsel %vm365, %v367, %v363
    %v369 = vrcp.pop %v336
    %v370 = vmul.f32 %v336, %v369
    %v371 = vsub.f32 1.0, %v370
    %v372 = vmul.f32 %v369, %v371
    %v373 = vadd.f32 %v369, %v372
    %vm374 = vweird.f32 %v336
    %vm375 = vweird.f32 %v369
    %vm376 = vmor %vm374, %vm375
    %v377 = vsel %vm376, %v369, %v373
    %v378 = vand.u32 2147483647, %v336
    %vm379 = vcmp.eq.f32.partialorder %v378, 8.507059e+37
    %v380 = vand.u32 %v336, 2147483648
    %v381 = vor.u32 1.1754944e-38, %v380
    %v382 = vsel %vm379, %v381, %v377
    %v383 = vrcp.pop %v339
    %v384 = vmul.f32 %v339, %v383
    %v385 = vsub.f32 1.0, %v384
    %v386 = vmul.f32 %v383, %v385
    %v387 = vadd.f32 %v383, %v386
    %vm388 = vweird.f32 %v339
    %vm389 = vweird.f32 %v383
    %vm390 = vmor %vm388, %vm389
    %v391 = vsel %vm390, %v383, %v387
    %v392 = vand.u32 2147483647, %v339
    %vm393 = vcmp.eq.f32.partialorder %v392, 8.507059e+37
    %v394 = vand.u32 %v339, 2147483648
    %v395 = vor.u32 1.1754944e-38, %v394
    %v396 = vsel %vm393, %v395, %v391
    %v397 = vrcp.pop %v342
    %v398 = vmul.f32 %v342, %v397
    %v399 = vsub.f32 1.0, %v398
    %v400 = vmul.f32 %v397, %v399
    %v401 = vadd.f32 %v397, %v400
    %vm402 = vweird.f32 %v342
    %vm403 = vweird.f32 %v397
    %vm404 = vmor %vm402, %vm403
    %v405 = vsel %vm404, %v397, %v401
    %v406 = vand.u32 2147483647, %v342
    %vm407 = vcmp.eq.f32.partialorder %v406, 8.507059e+37
    %v408 = vand.u32 %v342, 2147483648
    %v409 = vor.u32 1.1754944e-38, %v408
    %v410 = vsel %vm407, %v409, %v405
    %v411 = vrcp.pop %v345
    %v412 = vmul.f32 %v345, %v411
    %v413 = vsub.f32 1.0, %v412
    %v414 = vmul.f32 %v411, %v413
    %v415 = vadd.f32 %v411, %v414
    %vm416 = vweird.f32 %v345
    %vm417 = vweird.f32 %v411
    %vm418 = vmor %vm416, %vm417
    %v419 = vsel %vm418, %v411, %v415
    %v420 = vand.u32 2147483647, %v345
    %vm421 = vcmp.eq.f32.partialorder %v420, 8.507059e+37
    %v422 = vand.u32 %v345, 2147483648
    %v423 = vor.u32 1.1754944e-38, %v422
    %v424 = vsel %vm421, %v423, %v419
    %v425 = vrcp.pop %v348
    %v426 = vmul.f32 %v348, %v425
    %v427 = vsub.f32 1.0, %v426
    %v428 = vmul.f32 %v425, %v427
    %v429 = vadd.f32 %v425, %v428
    %vm430 = vweird.f32 %v348
    %vm431 = vweird.f32 %v425
    %vm432 = vmor %vm430, %vm431
    %v433 = vsel %vm432, %v425, %v429
    %v434 = vand.u32 2147483647, %v348
    %vm435 = vcmp.eq.f32.partialorder %v434, 8.507059e+37
    %v436 = vand.u32 %v348, 2147483648
    %v437 = vor.u32 1.1754944e-38, %v436
    %v438 = vsel %vm435, %v437, %v433
    %v439 = vrcp.pop %v351
    %v440 = vmul.f32 %v351, %v439
    %v441 = vsub.f32 1.0, %v440
    %v442 = vmul.f32 %v439, %v441
    %v443 = vadd.f32 %v439, %v442
    %vm444 = vweird.f32 %v351
    %vm445 = vweird.f32 %v439
    %vm446 = vmor %vm444, %vm445
    %v447 = vsel %vm446, %v439, %v443
    %v448 = vand.u32 2147483647, %v351
    %vm449 = vcmp.eq.f32.partialorder %v448, 8.507059e+37
    %v450 = vand.u32 %v351, 2147483648
    %v451 = vor.u32 1.1754944e-38, %v450
    %v452 = vsel %vm449, %v451, %v447
    %v453 = vrcp.pop %v354
    %v454 = vmul.f32 %v354, %v453
    %v455 = vsub.f32 1.0, %v454
    %v456 = vmul.f32 %v453, %v455
    %v457 = vadd.f32 %v453, %v456
    %vm458 = vweird.f32 %v354
    %vm459 = vweird.f32 %v453
    %vm460 = vmor %vm458, %vm459
    %v461 = vsel %vm460, %v453, %v457
    %v462 = vand.u32 2147483647, %v354
    %vm463 = vcmp.eq.f32.partialorder %v462, 8.507059e+37
    %v464 = vand.u32 %v354, 2147483648
    %v465 = vor.u32 1.1754944e-38, %v464
    %v466 = vsel %vm463, %v465, %v461
    %v467 = vmul.f32 %v316, %v368
    %v468 = vmul.f32 %v318, %v382
    %v469 = vmul.f32 %v320, %v396
    %v470 = vmul.f32 %v322, %v410
    %v471 = vmul.f32 %v324, %v424
    %v472 = vmul.f32 %v326, %v438
    %v473 = vmul.f32 %v328, %v452
    %v474 = vmul.f32 %v330, %v466
    %v476 = vsel %vm282, %v467, 0
    %v479 = vsel %vm282, %v468, 0
    %v482 = vsel %vm282, %v469, 0
    %v485 = vsel %vm282, %v470, 0
    %v488 = vsel %vm282, %v471, 0
    %v491 = vsel %vm282, %v472, 0
    %v494 = vsel %vm282, %v473, 0
    %v497 = vsel %vm282, %v474, 0
    %499 = vmatpush.msra.mxu0 0.0
    %500 = vmatpush.msra.mxu0 0.0
    %501 = vmatpush.msra.mxu0 0.0
    %502 = vmatpush.msra.mxu0 0.0
    %503 = vmatpush.msra.mxu0 0.0
    %504 = vmatpush.msra.mxu0 0.0
    %505 = vmatpush.msra.mxu0 0.0
    %506 = vmatpush.msra.mxu0 0.0
    %507 = vmatpush.msra.mxu0 0.0
    %508 = vmatpush.msra.mxu0 0.0
    %509 = vmatpush.msra.mxu0 0.0
    %510 = vmatpush.msra.mxu0 0.0
    %511 = vmatpush.msra.mxu0 0.0
    %512 = vmatpush.msra.mxu0 0.0
    %513 = vmatpush.msra.mxu0 %v201
    %514 = vmatpush.msra.mxu0 %v198
    %515 = vmatmul.f32.gmra.mxu0 %v476
    %v516 = vpop.f32.mrf.mxu0
    %v517 = vadd.f32 0.0, %v516
    %518 = vmatmul.f32.gmra.mxu0 %v479
    %v519 = vpop.f32.mrf.mxu0
    %v520 = vadd.f32 0.0, %v519
    %521 = vmatmul.f32.gmra.mxu0 %v482
    %v522 = vpop.f32.mrf.mxu0
    %v523 = vadd.f32 0.0, %v522
    %524 = vmatmul.f32.gmra.mxu0 %v485
    %v525 = vpop.f32.mrf.mxu0
    %v526 = vadd.f32 0.0, %v525
    %527 = vmatmul.f32.gmra.mxu0 %v488
    %v528 = vpop.f32.mrf.mxu0
    %v529 = vadd.f32 0.0, %v528
    %530 = vmatmul.f32.gmra.mxu0 %v491
    %v531 = vpop.f32.mrf.mxu0
    %v532 = vadd.f32 0.0, %v531
    %533 = vmatmul.f32.gmra.mxu0 %v494
    %v534 = vpop.f32.mrf.mxu0
    %v535 = vadd.f32 0.0, %v534
    %536 = vmatmul.f32.gmra.mxu0 %v497
    %v537 = vpop.f32.mrf.mxu0
    %v538 = vadd.f32 0.0, %v537
    %539 = vdwg.mxu0
    %v540 = vmul.f32 %v517, %v17
    %v541 = vmul.f32 %v520, %v18
    %v542 = vmul.f32 %v523, %v19
    %v543 = vmul.f32 %v526, %v20
    %v544 = vmul.f32 %v529, %v21
    %v545 = vmul.f32 %v532, %v22
    %v546 = vmul.f32 %v535, %v23
    %v547 = vmul.f32 %v538, %v24
    %v548 = vadd.f32 %v540, %v542
    %v549 = vadd.f32 %v541, %v543
    %v550 = vadd.f32 %v548, %v544
    %v551 = vadd.f32 %v549, %v545
    %v552 = vadd.f32 %v550, %v546
    %v553 = vadd.f32 %v551, %v547
    %v554 = vperm.slane %v117, 0
    %v556 = vsel %vm125, %v552, 0
    %v559 = vsel %vm125, %v553, 0
    %561 = vmatpush.msra.mxu0 0.0
    %562 = vmatpush.msra.mxu0 0.0
    %563 = vmatpush.msra.mxu0 0.0
    %564 = vmatpush.msra.mxu0 0.0
    %565 = vmatpush.msra.mxu0 0.0
    %566 = vmatpush.msra.mxu0 0.0
    %567 = vmatpush.msra.mxu0 0.0
    %568 = vmatpush.msra.mxu0 0.0
    %569 = vmatpush.msra.mxu0 0.0
    %570 = vmatpush.msra.mxu0 0.0
    %571 = vmatpush.msra.mxu0 0.0
    %572 = vmatpush.msra.mxu0 0.0
    %573 = vmatpush.msra.mxu0 %v101
    %574 = vmatpush.msra.mxu0 %v100
    %575 = vmatpush.msra.mxu0 %v99
    %576 = vmatpush.msra.mxu0 %v98
    %577 = vmatmul.f32.gmra.mxu0 %v556
    %v578 = vpop.f32.mrf.mxu0
    %v579 = vadd.f32 %v554, %v578
    %580 = vmatmul.f32.gmra.mxu0 %v559
    %v581 = vpop.f32.mrf.mxu0
    %v582 = vadd.f32 %v554, %v581
    %583 = vdwg.mxu0
    %v584 = vadd.f32 %v579, %v81
    %v585 = vadd.f32 %v582, %v84
    %v586 = vsel %vm125, %v584, 0.0
    %587 = vadd.xlane.f32.xlu0 %v586
    %v588 = vpop.xlane.xlu0 %587
    %v589 = vsel %vm125, %v585, 0.0
    %590 = vadd.xlane.f32.xlu0 %v589
    %v591 = vpop.xlane.xlu0 %590
    %v592 = vrcp.pop 32.0
    %v593 = vmul.f32 32.0, %v592
    %v594 = vsub.f32 1.0, %v593
    %v595 = vmul.f32 %v592, %v594
    %v596 = vadd.f32 %v592, %v595
    %vm597 = vweird.f32 %v592
    %v598 = vsel %vm597, %v592, %v596
    %v599 = vmul.f32 %v588, %v598
    %v600 = vmul.f32 %v591, %v598
    %v601 = vsub.f32 %v584, %v599
    %v602 = vsub.f32 %v585, %v600
    %v603 = vmul.f32 %v601, %v601
    %v604 = vmul.f32 %v602, %v602
    %v605 = vsel %vm125, %v603, 0.0
    %606 = vadd.xlane.f32.xlu0 %v605
    %v607 = vpop.xlane.xlu0 %606
    %v608 = vsel %vm125, %v604, 0.0
    %609 = vadd.xlane.f32.xlu0 %v608
    %v610 = vpop.xlane.xlu0 %609
    %v611 = vmul.f32 %v607, %v598
    %v612 = vmul.f32 %v610, %v598
    %v613 = vadd.f32 %v611, 1e-06
    %v614 = vadd.f32 %v612, 1e-06
    %v615 = vrsqrt.pop %v613
    %v616 = vmul.f32 %v615, %v613
    %v617 = vmul.f32 %v616, %v615
    %v618 = vmul.f32 0.5, %v617
    %v619 = vsub.f32 1.5, %v618
    %v620 = vmul.f32 %v615, %v619
    %vm621 = vweird.f32 %v613
    %vm622 = vweird.f32 %v615
    %vm623 = vmor %vm621, %vm622
    %v624 = vsel %vm623, %v615, %v620
    %v625 = vrsqrt.pop %v614
    %v626 = vmul.f32 %v625, %v614
    %v627 = vmul.f32 %v626, %v625
    %v628 = vmul.f32 0.5, %v627
    %v629 = vsub.f32 1.5, %v628
    %v630 = vmul.f32 %v625, %v629
    %vm631 = vweird.f32 %v614
    %vm632 = vweird.f32 %v625
    %vm633 = vmor %vm631, %vm632
    %v634 = vsel %vm633, %v625, %v630
    %v635 = vmul.f32 %v601, %v624
    %v636 = vmul.f32 %v602, %v634
    %v637 = vperm.slane %v118, 0
    %v638 = vmul.f32 %v635, %v637
    %v639 = vmul.f32 %v636, %v637
    %v640 = vperm.slane %v119, 0
    %v641 = vadd.f32 %v638, %v640
    %v642 = vadd.f32 %v639, %v640
    %v643 = vperm.slane %v120, 0
    %v645 = vsel %vm125, %v641, 0
    %v648 = vsel %vm125, %v642, 0
    %650 = vmatpush.msra.mxu0 0.0
    %651 = vmatpush.msra.mxu0 0.0
    %652 = vmatpush.msra.mxu0 0.0
    %653 = vmatpush.msra.mxu0 0.0
    %654 = vmatpush.msra.mxu0 0.0
    %655 = vmatpush.msra.mxu0 0.0
    %656 = vmatpush.msra.mxu0 0.0
    %657 = vmatpush.msra.mxu0 0.0
    %658 = vmatpush.msra.mxu0 0.0
    %659 = vmatpush.msra.mxu0 0.0
    %660 = vmatpush.msra.mxu0 0.0
    %661 = vmatpush.msra.mxu0 0.0
    %662 = vmatpush.msra.mxu0 %v113
    %663 = vmatpush.msra.mxu0 %v112
    %664 = vmatpush.msra.mxu0 %v111
    %665 = vmatpush.msra.mxu0 %v110
    %666 = vmatmul.f32.gmra.mxu0 %v645
    %v667 = vpop.f32.mrf.mxu0
    %v668 = vadd.f32 %v643, %v667
    %669 = vmatmul.f32.gmra.mxu0 %v648
    %v670 = vpop.f32.mrf.mxu0
    %v671 = vadd.f32 %v643, %v670
    %672 = vdwg.mxu0
    %v673 = vmax.f32 %v668, 0.0
    %v674 = vmax.f32 %v671, 0.0
    %v675 = vperm.slane %v121, 0
    %vm676 = vcmask 523264
    %v678 = vsel %vm676, %v673, 0
    %v681 = vsel %vm676, %v674, 0
    %683 = vmatpush.msra.mxu0 0.0
    %684 = vmatpush.msra.mxu0 0.0
    %685 = vmatpush.msra.mxu0 0.0
    %686 = vmatpush.msra.mxu0 0.0
    %687 = vmatpush.msra.mxu0 0.0
    %688 = vmatpush.msra.mxu0 0.0
    %689 = vmatpush.msra.mxu0 0.0
    %690 = vmatpush.msra.mxu0 0.0
    %691 = vmatpush.msra.mxu0 %v109
    %692 = vmatpush.msra.mxu0 %v108
    %693 = vmatpush.msra.mxu0 %v107
    %694 = vmatpush.msra.mxu0 %v106
    %695 = vmatpush.msra.mxu0 %v105
    %696 = vmatpush.msra.mxu0 %v104
    %697 = vmatpush.msra.mxu0 %v103
    %698 = vmatpush.msra.mxu0 %v102
    %699 = vmatmul.f32.gmra.mxu0 %v678
    %v700 = vpop.f32.mrf.mxu0
    %v701 = vadd.f32 %v675, %v700
    %702 = vmatmul.f32.gmra.mxu0 %v681
    %v703 = vpop.f32.mrf.mxu0
    %v704 = vadd.f32 %v675, %v703
    %705 = vdwg.mxu0
    %v706 = vadd.f32 %v701, %v641
    %v707 = vadd.f32 %v704, %v642
    %v708 = vsel %vm125, %v706, 0.0
    %709 = vadd.xlane.f32.xlu0 %v708
    %v710 = vpop.xlane.xlu0 %709
    %v711 = vsel %vm125, %v707, 0.0
    %712 = vadd.xlane.f32.xlu0 %v711
    %v713 = vpop.xlane.xlu0 %712
    %v714 = vmul.f32 %v710, %v598
    %v715 = vmul.f32 %v713, %v598
    %v716 = vsub.f32 %v706, %v714
    %v717 = vsub.f32 %v707, %v715
    %v718 = vmul.f32 %v716, %v716
    %v719 = vmul.f32 %v717, %v717
    %v720 = vsel %vm125, %v718, 0.0
    %721 = vadd.xlane.f32.xlu0 %v720
    %v722 = vpop.xlane.xlu0 %721
    %v723 = vsel %vm125, %v719, 0.0
    %724 = vadd.xlane.f32.xlu0 %v723
    %v725 = vpop.xlane.xlu0 %724
    %v726 = vmul.f32 %v722, %v598
    %v727 = vmul.f32 %v725, %v598
    %v728 = vadd.f32 %v726, 1e-06
    %v729 = vadd.f32 %v727, 1e-06
    %v730 = vrsqrt.pop %v728
    %v731 = vmul.f32 %v730, %v728
    %v732 = vmul.f32 %v731, %v730
    %v733 = vmul.f32 0.5, %v732
    %v734 = vsub.f32 1.5, %v733
    %v735 = vmul.f32 %v730, %v734
    %vm736 = vweird.f32 %v728
    %vm737 = vweird.f32 %v730
    %vm738 = vmor %vm736, %vm737
    %v739 = vsel %vm738, %v730, %v735
    %v740 = vrsqrt.pop %v729
    %v741 = vmul.f32 %v740, %v729
    %v742 = vmul.f32 %v741, %v740
    %v743 = vmul.f32 0.5, %v742
    %v744 = vsub.f32 1.5, %v743
    %v745 = vmul.f32 %v740, %v744
    %vm746 = vweird.f32 %v729
    %vm747 = vweird.f32 %v740
    %vm748 = vmor %vm746, %vm747
    %v749 = vsel %vm748, %v740, %v745
    %v750 = vmul.f32 %v716, %v739
    %v751 = vmul.f32 %v717, %v749
    %v752 = vperm.slane %v122, 0
    %v753 = vmul.f32 %v750, %v752
    %v754 = vmul.f32 %v751, %v752
    %v755 = vperm.slane %v123, 0
    %v756 = vadd.f32 %v753, %v755
    %v757 = vadd.f32 %v754, %v755
    %v758 = vld [vmem:[%s1 + $0x188] sm:$0xff]
    %v759 = vld [vmem:[%s1 + $0x190] sm:$0xff]
    %v760 = vld [vmem:[%s1 + $0x198] sm:$0xff]
    %v761 = vld [vmem:[%s1 + $0x1a0] sm:$0xff]
    %v762 = vld [vmem:[%s1 + $0x1a8] sm:$0xff]
    %v763 = vld [vmem:[%s1 + $0x1b0] sm:$0xff]
    %v764 = vld [vmem:[%s1 + $0x1b8] sm:$0xff]
    %v765 = vld [vmem:[%s1 + $0x1c0] sm:$0xff]
    %v766 = vld [vmem:[%s1 + $0x1c8] sm:$0xff]
    %v767 = vld [vmem:[%s1 + $0x1d0] sm:$0xff]
    %v768 = vld [vmem:[%s1 + $0x1d8] sm:$0xff]
    %v769 = vld [vmem:[%s1 + $0x1e0] sm:$0xff]
    %v770 = vld [vmem:[%s1 + $0x1e8] sm:$0xff]
    %v771 = vld [vmem:[%s1 + $0x1f0] sm:$0xff]
    %v772 = vld [vmem:[%s1 + $0x1f8] sm:$0xff]
    %v773 = vld [vmem:[%s1 + $0x200] sm:$0xff]
    %v774 = vld [vmem:[%s1 + $0x208] sm:$0xff]
    %v775 = vld [vmem:[%s1 + $0x210] sm:$0xff]
    %v776 = vld [vmem:[%s1 + $0x218] sm:$0xff]
    %v777 = vld [vmem:[%s1 + $0x220] sm:$0xff]
    %v778 = vld [vmem:[%s1 + $0x228] sm:$0xff]
    %v779 = vld [vmem:[%s1 + $0x230] sm:$0xff]
    %v780 = vld [vmem:[%s1 + $0x238] sm:$0xff]
    %v781 = vld [vmem:[%s1 + $0x240] sm:$0xff]
    %v782 = vld [vmem:[%s2 + $0x30] sm:$0xff]
    %v783 = vld [vmem:[%s2 + $0x38] sm:$0xff]
    %v784 = vld [vmem:[%s2 + $0x40] sm:$0xff]
    %v785 = vld [vmem:[%s2 + $0x48] sm:$0xff]
    %v786 = vld [vmem:[%s2 + $0x50] sm:$0x1]
    %v787 = vld [vmem:[%s2 + $0x51] sm:$0x1]
    %v788 = vld [vmem:[%s2 + $0x52] sm:$0x1]
    %v789 = vld [vmem:[%s2 + $0x53] sm:$0x1]
    %v790 = vld [vmem:[%s2 + $0x54] sm:$0x1]
    %v791 = vld [vmem:[%s2 + $0x55] sm:$0x1]
    %v792 = vld [vmem:[%s2 + $0x56] sm:$0x1]
    %v793 = vld [vmem:[%s2 + $0x57] sm:$0x1]
    %v794 = vld [vmem:[%s2 + $0x58] sm:$0x1]
    %v795 = vld [vmem:[%s2 + $0x59] sm:$0x1]
    %v796 = vperm.slane %v786, 0
    %v798 = vsel %vm125, %v756, 0
    %v801 = vsel %vm125, %v757, 0
    %803 = vmatpush.msra.mxu0 0.0
    %804 = vmatpush.msra.mxu0 0.0
    %805 = vmatpush.msra.mxu0 0.0
    %806 = vmatpush.msra.mxu0 0.0
    %807 = vmatpush.msra.mxu0 0.0
    %808 = vmatpush.msra.mxu0 0.0
    %809 = vmatpush.msra.mxu0 0.0
    %810 = vmatpush.msra.mxu0 0.0
    %811 = vmatpush.msra.mxu0 0.0
    %812 = vmatpush.msra.mxu0 0.0
    %813 = vmatpush.msra.mxu0 0.0
    %814 = vmatpush.msra.mxu0 0.0
    %815 = vmatpush.msra.mxu0 %v761
    %816 = vmatpush.msra.mxu0 %v760
    %817 = vmatpush.msra.mxu0 %v759
    %818 = vmatpush.msra.mxu0 %v758
    %819 = vmatmul.f32.gmra.mxu0 %v798
    %v820 = vpop.f32.mrf.mxu0
    %v821 = vadd.f32 %v796, %v820
    %822 = vmatmul.f32.gmra.mxu0 %v801
    %v823 = vpop.f32.mrf.mxu0
    %v824 = vadd.f32 %v796, %v823
    %825 = vdwg.mxu0
    %v826 = vperm.slane %v787, 0
    %827 = vmatpush.msra.mxu0 0.0
    %828 = vmatpush.msra.mxu0 0.0
    %829 = vmatpush.msra.mxu0 0.0
    %830 = vmatpush.msra.mxu0 0.0
    %831 = vmatpush.msra.mxu0 0.0
    %832 = vmatpush.msra.mxu0 0.0
    %833 = vmatpush.msra.mxu0 0.0
    %834 = vmatpush.msra.mxu0 0.0
    %835 = vmatpush.msra.mxu0 0.0
    %836 = vmatpush.msra.mxu0 0.0
    %837 = vmatpush.msra.mxu0 0.0
    %838 = vmatpush.msra.mxu0 0.0
    %839 = vmatpush.msra.mxu0 %v765
    %840 = vmatpush.msra.mxu0 %v764
    %841 = vmatpush.msra.mxu0 %v763
    %842 = vmatpush.msra.mxu0 %v762
    %843 = vmatmul.f32.gmra.mxu0 %v798
    %v844 = vpop.f32.mrf.mxu0
    %v845 = vadd.f32 %v826, %v844
    %846 = vmatmul.f32.gmra.mxu0 %v801
    %v847 = vpop.f32.mrf.mxu0
    %v848 = vadd.f32 %v826, %v847
    %849 = vdwg.mxu0
    %v850 = vperm.slane %v788, 0
    %851 = vmatpush.msra.mxu0 0.0
    %852 = vmatpush.msra.mxu0 0.0
    %853 = vmatpush.msra.mxu0 0.0
    %854 = vmatpush.msra.mxu0 0.0
    %855 = vmatpush.msra.mxu0 0.0
    %856 = vmatpush.msra.mxu0 0.0
    %857 = vmatpush.msra.mxu0 0.0
    %858 = vmatpush.msra.mxu0 0.0
    %859 = vmatpush.msra.mxu0 0.0
    %860 = vmatpush.msra.mxu0 0.0
    %861 = vmatpush.msra.mxu0 0.0
    %862 = vmatpush.msra.mxu0 0.0
    %863 = vmatpush.msra.mxu0 %v769
    %864 = vmatpush.msra.mxu0 %v768
    %865 = vmatpush.msra.mxu0 %v767
    %866 = vmatpush.msra.mxu0 %v766
    %867 = vmatmul.f32.gmra.mxu0 %v798
    %v868 = vpop.f32.mrf.mxu0
    %v869 = vadd.f32 %v850, %v868
    %870 = vmatmul.f32.gmra.mxu0 %v801
    %v871 = vpop.f32.mrf.mxu0
    %v872 = vadd.f32 %v850, %v871
    %873 = vdwg.mxu0
    %v874 = vmul.f32 %v821, %v17
    %v875 = vmul.f32 %v824, %v18
    %v876 = vmul.f32 %v821, %v19
    %v877 = vmul.f32 %v824, %v20
    %v878 = vmul.f32 %v821, %v21
    %v879 = vmul.f32 %v824, %v22
    %v880 = vmul.f32 %v821, %v23
    %v881 = vmul.f32 %v824, %v24
    %v883 = vsel %vm125, %v874, 0
    %v886 = vsel %vm125, %v875, 0
    %v889 = vsel %vm125, %v876, 0
    %v892 = vsel %vm125, %v877, 0
    %v895 = vsel %vm125, %v878, 0
    %v898 = vsel %vm125, %v879, 0
    %v901 = vsel %vm125, %v880, 0
    %v904 = vsel %vm125, %v881, 0
    %v907 = vsel %vm125, %v845, 0
    %v910 = vsel %vm125, %v848, 0
    %912 = vmatpush.xpose.msra.mxu0 0.0
    %913 = vmatpush.xpose.msra.mxu0 0.0
    %914 = vmatpush.xpose.msra.mxu0 0.0
    %915 = vmatpush.xpose.msra.mxu0 0.0
    %916 = vmatpush.xpose.msra.mxu0 0.0
    %917 = vmatpush.xpose.msra.mxu0 0.0
    %918 = vmatpush.xpose.msra.mxu0 0.0
    %919 = vmatpush.xpose.msra.mxu0 0.0
    %920 = vmatpush.xpose.msra.mxu0 0.0
    %921 = vmatpush.xpose.msra.mxu0 0.0
    %922 = vmatpush.xpose.msra.mxu0 0.0
    %923 = vmatpush.xpose.msra.mxu0 0.0
    %924 = vmatpush.xpose.msra.mxu0 0.0
    %925 = vmatpush.xpose.msra.mxu0 0.0
    %926 = vmatpush.xpose.msra.mxu0 %v910
    %927 = vmatpush.xpose.msra.mxu0 %v907
    %928 = vmatmul.f32.gmra.mxu0 %v883
    %v929 = vpop.f32.mrf.mxu0
    %v930 = vadd.f32 %v25, %v929
    %931 = vmatmul.f32.gmra.mxu0 %v886
    %v932 = vpop.f32.mrf.mxu0
    %v933 = vadd.f32 %v26, %v932
    %934 = vmatmul.f32.gmra.mxu0 %v889
    %v935 = vpop.f32.mrf.mxu0
    %v936 = vadd.f32 %v27, %v935
    %937 = vmatmul.f32.gmra.mxu0 %v892
    %v938 = vpop.f32.mrf.mxu0
    %v939 = vadd.f32 %v28, %v938
    %940 = vmatmul.f32.gmra.mxu0 %v895
    %v941 = vpop.f32.mrf.mxu0
    %v942 = vadd.f32 %v29, %v941
    %943 = vmatmul.f32.gmra.mxu0 %v898
    %v944 = vpop.f32.mrf.mxu0
    %v945 = vadd.f32 %v30, %v944
    %946 = vmatmul.f32.gmra.mxu0 %v901
    %v947 = vpop.f32.mrf.mxu0
    %v948 = vadd.f32 %v31, %v947
    %949 = vmatmul.f32.gmra.mxu0 %v904
    %v950 = vpop.f32.mrf.mxu0
    %v951 = vadd.f32 %v32, %v950
    %952 = vdwg.mxu0
    %v953 = vsel %vm282, %v930, -inf
    %954 = vmax.xlane.f32.xlu0 %v953
    %v955 = vpop.xlane.xlu0 %954
    %v956 = vsel %vm282, %v933, -inf
    %957 = vmax.xlane.f32.xlu0 %v956
    %v958 = vpop.xlane.xlu0 %957
    %v959 = vsel %vm282, %v936, -inf
    %960 = vmax.xlane.f32.xlu0 %v959
    %v961 = vpop.xlane.xlu0 %960
    %v962 = vsel %vm282, %v939, -inf
    %963 = vmax.xlane.f32.xlu0 %v962
    %v964 = vpop.xlane.xlu0 %963
    %v965 = vsel %vm282, %v942, -inf
    %966 = vmax.xlane.f32.xlu0 %v965
    %v967 = vpop.xlane.xlu0 %966
    %v968 = vsel %vm282, %v945, -inf
    %969 = vmax.xlane.f32.xlu0 %v968
    %v970 = vpop.xlane.xlu0 %969
    %v971 = vsel %vm282, %v948, -inf
    %972 = vmax.xlane.f32.xlu0 %v971
    %v973 = vpop.xlane.xlu0 %972
    %v974 = vsel %vm282, %v951, -inf
    %975 = vmax.xlane.f32.xlu0 %v974
    %v976 = vpop.xlane.xlu0 %975
    %v977 = vsub.f32 %v930, %v955
    %v978 = vsub.f32 %v933, %v958
    %v979 = vsub.f32 %v936, %v961
    %v980 = vsub.f32 %v939, %v964
    %v981 = vsub.f32 %v942, %v967
    %v982 = vsub.f32 %v945, %v970
    %v983 = vsub.f32 %v948, %v973
    %v984 = vsub.f32 %v951, %v976
    %v985 = vmul.f32 %v977, 1.442695
    %v986 = vpow.pop %v985
    %v987 = vmul.f32 %v978, 1.442695
    %v988 = vpow.pop %v987
    %v989 = vmul.f32 %v979, 1.442695
    %v990 = vpow.pop %v989
    %v991 = vmul.f32 %v980, 1.442695
    %v992 = vpow.pop %v991
    %v993 = vmul.f32 %v981, 1.442695
    %v994 = vpow.pop %v993
    %v995 = vmul.f32 %v982, 1.442695
    %v996 = vpow.pop %v995
    %v997 = vmul.f32 %v983, 1.442695
    %v998 = vpow.pop %v997
    %v999 = vmul.f32 %v984, 1.442695
    %v1000 = vpow.pop %v999
    %v1001 = vsel %vm282, %v986, 0.0
    %1002 = vadd.xlane.f32.xlu0 %v1001
    %v1003 = vpop.xlane.xlu0 %1002
    %v1004 = vsel %vm282, %v988, 0.0
    %1005 = vadd.xlane.f32.xlu0 %v1004
    %v1006 = vpop.xlane.xlu0 %1005
    %v1007 = vsel %vm282, %v990, 0.0
    %1008 = vadd.xlane.f32.xlu0 %v1007
    %v1009 = vpop.xlane.xlu0 %1008
    %v1010 = vsel %vm282, %v992, 0.0
    %1011 = vadd.xlane.f32.xlu0 %v1010
    %v1012 = vpop.xlane.xlu0 %1011
    %v1013 = vsel %vm282, %v994, 0.0
    %1014 = vadd.xlane.f32.xlu0 %v1013
    %v1015 = vpop.xlane.xlu0 %1014
    %v1016 = vsel %vm282, %v996, 0.0
    %1017 = vadd.xlane.f32.xlu0 %v1016
    %v1018 = vpop.xlane.xlu0 %1017
    %v1019 = vsel %vm282, %v998, 0.0
    %1020 = vadd.xlane.f32.xlu0 %v1019
    %v1021 = vpop.xlane.xlu0 %1020
    %v1022 = vsel %vm282, %v1000, 0.0
    %1023 = vadd.xlane.f32.xlu0 %v1022
    %v1024 = vpop.xlane.xlu0 %1023
    %v1025 = vrcp.pop %v1003
    %v1026 = vmul.f32 %v1003, %v1025
    %v1027 = vsub.f32 1.0, %v1026
    %v1028 = vmul.f32 %v1025, %v1027
    %v1029 = vadd.f32 %v1025, %v1028
    %vm1030 = vweird.f32 %v1003
    %vm1031 = vweird.f32 %v1025
    %vm1032 = vmor %vm1030, %vm1031
    %v1033 = vsel %vm1032, %v1025, %v1029
    %v1034 = vand.u32 2147483647, %v1003
    %vm1035 = vcmp.eq.f32.partialorder %v1034, 8.507059e+37
    %v1036 = vand.u32 %v1003, 2147483648
    %v1037 = vor.u32 1.1754944e-38, %v1036
    %v1038 = vsel %vm1035, %v1037, %v1033
    %v1039 = vrcp.pop %v1006
    %v1040 = vmul.f32 %v1006, %v1039
    %v1041 = vsub.f32 1.0, %v1040
    %v1042 = vmul.f32 %v1039, %v1041
    %v1043 = vadd.f32 %v1039, %v1042
    %vm1044 = vweird.f32 %v1006
    %vm1045 = vweird.f32 %v1039
    %vm1046 = vmor %vm1044, %vm1045
    %v1047 = vsel %vm1046, %v1039, %v1043
    %v1048 = vand.u32 2147483647, %v1006
    %vm1049 = vcmp.eq.f32.partialorder %v1048, 8.507059e+37
    %v1050 = vand.u32 %v1006, 2147483648
    %v1051 = vor.u32 1.1754944e-38, %v1050
    %v1052 = vsel %vm1049, %v1051, %v1047
    %v1053 = vrcp.pop %v1009
    %v1054 = vmul.f32 %v1009, %v1053
    %v1055 = vsub.f32 1.0, %v1054
    %v1056 = vmul.f32 %v1053, %v1055
    %v1057 = vadd.f32 %v1053, %v1056
    %vm1058 = vweird.f32 %v1009
    %vm1059 = vweird.f32 %v1053
    %vm1060 = vmor %vm1058, %vm1059
    %v1061 = vsel %vm1060, %v1053, %v1057
    %v1062 = vand.u32 2147483647, %v1009
    %vm1063 = vcmp.eq.f32.partialorder %v1062, 8.507059e+37
    %v1064 = vand.u32 %v1009, 2147483648
    %v1065 = vor.u32 1.1754944e-38, %v1064
    %v1066 = vsel %vm1063, %v1065, %v1061
    %v1067 = vrcp.pop %v1012
    %v1068 = vmul.f32 %v1012, %v1067
    %v1069 = vsub.f32 1.0, %v1068
    %v1070 = vmul.f32 %v1067, %v1069
    %v1071 = vadd.f32 %v1067, %v1070
    %vm1072 = vweird.f32 %v1012
    %vm1073 = vweird.f32 %v1067
    %vm1074 = vmor %vm1072, %vm1073
    %v1075 = vsel %vm1074, %v1067, %v1071
    %v1076 = vand.u32 2147483647, %v1012
    %vm1077 = vcmp.eq.f32.partialorder %v1076, 8.507059e+37
    %v1078 = vand.u32 %v1012, 2147483648
    %v1079 = vor.u32 1.1754944e-38, %v1078
    %v1080 = vsel %vm1077, %v1079, %v1075
    %v1081 = vrcp.pop %v1015
    %v1082 = vmul.f32 %v1015, %v1081
    %v1083 = vsub.f32 1.0, %v1082
    %v1084 = vmul.f32 %v1081, %v1083
    %v1085 = vadd.f32 %v1081, %v1084
    %vm1086 = vweird.f32 %v1015
    %vm1087 = vweird.f32 %v1081
    %vm1088 = vmor %vm1086, %vm1087
    %v1089 = vsel %vm1088, %v1081, %v1085
    %v1090 = vand.u32 2147483647, %v1015
    %vm1091 = vcmp.eq.f32.partialorder %v1090, 8.507059e+37
    %v1092 = vand.u32 %v1015, 2147483648
    %v1093 = vor.u32 1.1754944e-38, %v1092
    %v1094 = vsel %vm1091, %v1093, %v1089
    %v1095 = vrcp.pop %v1018
    %v1096 = vmul.f32 %v1018, %v1095
    %v1097 = vsub.f32 1.0, %v1096
    %v1098 = vmul.f32 %v1095, %v1097
    %v1099 = vadd.f32 %v1095, %v1098
    %vm1100 = vweird.f32 %v1018
    %vm1101 = vweird.f32 %v1095
    %vm1102 = vmor %vm1100, %vm1101
    %v1103 = vsel %vm1102, %v1095, %v1099
    %v1104 = vand.u32 2147483647, %v1018
    %vm1105 = vcmp.eq.f32.partialorder %v1104, 8.507059e+37
    %v1106 = vand.u32 %v1018, 2147483648
    %v1107 = vor.u32 1.1754944e-38, %v1106
    %v1108 = vsel %vm1105, %v1107, %v1103
    %v1109 = vrcp.pop %v1021
    %v1110 = vmul.f32 %v1021, %v1109
    %v1111 = vsub.f32 1.0, %v1110
    %v1112 = vmul.f32 %v1109, %v1111
    %v1113 = vadd.f32 %v1109, %v1112
    %vm1114 = vweird.f32 %v1021
    %vm1115 = vweird.f32 %v1109
    %vm1116 = vmor %vm1114, %vm1115
    %v1117 = vsel %vm1116, %v1109, %v1113
    %v1118 = vand.u32 2147483647, %v1021
    %vm1119 = vcmp.eq.f32.partialorder %v1118, 8.507059e+37
    %v1120 = vand.u32 %v1021, 2147483648
    %v1121 = vor.u32 1.1754944e-38, %v1120
    %v1122 = vsel %vm1119, %v1121, %v1117
    %v1123 = vrcp.pop %v1024
    %v1124 = vmul.f32 %v1024, %v1123
    %v1125 = vsub.f32 1.0, %v1124
    %v1126 = vmul.f32 %v1123, %v1125
    %v1127 = vadd.f32 %v1123, %v1126
    %vm1128 = vweird.f32 %v1024
    %vm1129 = vweird.f32 %v1123
    %vm1130 = vmor %vm1128, %vm1129
    %v1131 = vsel %vm1130, %v1123, %v1127
    %v1132 = vand.u32 2147483647, %v1024
    %vm1133 = vcmp.eq.f32.partialorder %v1132, 8.507059e+37
    %v1134 = vand.u32 %v1024, 2147483648
    %v1135 = vor.u32 1.1754944e-38, %v1134
    %v1136 = vsel %vm1133, %v1135, %v1131
    %v1137 = vmul.f32 %v986, %v1038
    %v1138 = vmul.f32 %v988, %v1052
    %v1139 = vmul.f32 %v990, %v1066
    %v1140 = vmul.f32 %v992, %v1080
    %v1141 = vmul.f32 %v994, %v1094
    %v1142 = vmul.f32 %v996, %v1108
    %v1143 = vmul.f32 %v998, %v1122
    %v1144 = vmul.f32 %v1000, %v1136
    %v1146 = vsel %vm282, %v1137, 0
    %v1149 = vsel %vm282, %v1138, 0
    %v1152 = vsel %vm282, %v1139, 0
    %v1155 = vsel %vm282, %v1140, 0
    %v1158 = vsel %vm282, %v1141, 0
    %v1161 = vsel %vm282, %v1142, 0
    %v1164 = vsel %vm282, %v1143, 0
    %v1167 = vsel %vm282, %v1144, 0
    %1169 = vmatpush.msra.mxu0 0.0
    %1170 = vmatpush.msra.mxu0 0.0
    %1171 = vmatpush.msra.mxu0 0.0
    %1172 = vmatpush.msra.mxu0 0.0
    %1173 = vmatpush.msra.mxu0 0.0
    %1174 = vmatpush.msra.mxu0 0.0
    %1175 = vmatpush.msra.mxu0 0.0
    %1176 = vmatpush.msra.mxu0 0.0
    %1177 = vmatpush.msra.mxu0 0.0
    %1178 = vmatpush.msra.mxu0 0.0
    %1179 = vmatpush.msra.mxu0 0.0
    %1180 = vmatpush.msra.mxu0 0.0
    %1181 = vmatpush.msra.mxu0 0.0
    %1182 = vmatpush.msra.mxu0 0.0
    %1183 = vmatpush.msra.mxu0 %v872
    %1184 = vmatpush.msra.mxu0 %v869
    %1185 = vmatmul.f32.gmra.mxu0 %v1146
    %v1186 = vpop.f32.mrf.mxu0
    %v1187 = vadd.f32 0.0, %v1186
    %1188 = vmatmul.f32.gmra.mxu0 %v1149
    %v1189 = vpop.f32.mrf.mxu0
    %v1190 = vadd.f32 0.0, %v1189
    %1191 = vmatmul.f32.gmra.mxu0 %v1152
    %v1192 = vpop.f32.mrf.mxu0
    %v1193 = vadd.f32 0.0, %v1192
    %1194 = vmatmul.f32.gmra.mxu0 %v1155
    %v1195 = vpop.f32.mrf.mxu0
    %v1196 = vadd.f32 0.0, %v1195
    %1197 = vmatmul.f32.gmra.mxu0 %v1158
    %v1198 = vpop.f32.mrf.mxu0
    %v1199 = vadd.f32 0.0, %v1198
    %1200 = vmatmul.f32.gmra.mxu0 %v1161
    %v1201 = vpop.f32.mrf.mxu0
    %v1202 = vadd.f32 0.0, %v1201
    %1203 = vmatmul.f32.gmra.mxu0 %v1164
    %v1204 = vpop.f32.mrf.mxu0
    %v1205 = vadd.f32 0.0, %v1204
    %1206 = vmatmul.f32.gmra.mxu0 %v1167
    %v1207 = vpop.f32.mrf.mxu0
    %v1208 = vadd.f32 0.0, %v1207
    %1209 = vdwg.mxu0
    %v1210 = vmul.f32 %v1187, %v17
    %v1211 = vmul.f32 %v1190, %v18
    %v1212 = vmul.f32 %v1193, %v19
    %v1213 = vmul.f32 %v1196, %v20
    %v1214 = vmul.f32 %v1199, %v21
    %v1215 = vmul.f32 %v1202, %v22
    %v1216 = vmul.f32 %v1205, %v23
    %v1217 = vmul.f32 %v1208, %v24
    %v1218 = vadd.f32 %v1210, %v1212
    %v1219 = vadd.f32 %v1211, %v1213
    %v1220 = vadd.f32 %v1218, %v1214
    %v1221 = vadd.f32 %v1219, %v1215
    %v1222 = vadd.f32 %v1220, %v1216
    %v1223 = vadd.f32 %v1221, %v1217
    %v1224 = vperm.slane %v789, 0
    %v1226 = vsel %vm125, %v1222, 0
    %v1229 = vsel %vm125, %v1223, 0
    %1231 = vmatpush.msra.mxu0 0.0
    %1232 = vmatpush.msra.mxu0 0.0
    %1233 = vmatpush.msra.mxu0 0.0
    %1234 = vmatpush.msra.mxu0 0.0
    %1235 = vmatpush.msra.mxu0 0.0
    %1236 = vmatpush.msra.mxu0 0.0
    %1237 = vmatpush.msra.mxu0 0.0
    %1238 = vmatpush.msra.mxu0 0.0
    %1239 = vmatpush.msra.mxu0 0.0
    %1240 = vmatpush.msra.mxu0 0.0
    %1241 = vmatpush.msra.mxu0 0.0
    %1242 = vmatpush.msra.mxu0 0.0
    %1243 = vmatpush.msra.mxu0 %v773
    %1244 = vmatpush.msra.mxu0 %v772
    %1245 = vmatpush.msra.mxu0 %v771
    %1246 = vmatpush.msra.mxu0 %v770
    %1247 = vmatmul.f32.gmra.mxu0 %v1226
    %v1248 = vpop.f32.mrf.mxu0
    %v1249 = vadd.f32 %v1224, %v1248
    %1250 = vmatmul.f32.gmra.mxu0 %v1229
    %v1251 = vpop.f32.mrf.mxu0
    %v1252 = vadd.f32 %v1224, %v1251
    %1253 = vdwg.mxu0
    %v1254 = vadd.f32 %v1249, %v756
    %v1255 = vadd.f32 %v1252, %v757
    %v1256 = vsel %vm125, %v1254, 0.0
    %1257 = vadd.xlane.f32.xlu0 %v1256
    %v1258 = vpop.xlane.xlu0 %1257
    %v1259 = vsel %vm125, %v1255, 0.0
    %1260 = vadd.xlane.f32.xlu0 %v1259
    %v1261 = vpop.xlane.xlu0 %1260
    %v1262 = vmul.f32 %v1258, %v598
    %v1263 = vmul.f32 %v1261, %v598
    %v1264 = vsub.f32 %v1254, %v1262
    %v1265 = vsub.f32 %v1255, %v1263
    %v1266 = vmul.f32 %v1264, %v1264
    %v1267 = vmul.f32 %v1265, %v1265
    %v1268 = vsel %vm125, %v1266, 0.0
    %1269 = vadd.xlane.f32.xlu0 %v1268
    %v1270 = vpop.xlane.xlu0 %1269
    %v1271 = vsel %vm125, %v1267, 0.0
    %1272 = vadd.xlane.f32.xlu0 %v1271
    %v1273 = vpop.xlane.xlu0 %1272
    %v1274 = vmul.f32 %v1270, %v598
    %v1275 = vmul.f32 %v1273, %v598
    %v1276 = vadd.f32 %v1274, 1e-06
    %v1277 = vadd.f32 %v1275, 1e-06
    %v1278 = vrsqrt.pop %v1276
    %v1279 = vmul.f32 %v1278, %v1276
    %v1280 = vmul.f32 %v1279, %v1278
    %v1281 = vmul.f32 0.5, %v1280
    %v1282 = vsub.f32 1.5, %v1281
    %v1283 = vmul.f32 %v1278, %v1282
    %vm1284 = vweird.f32 %v1276
    %vm1285 = vweird.f32 %v1278
    %vm1286 = vmor %vm1284, %vm1285
    %v1287 = vsel %vm1286, %v1278, %v1283
    %v1288 = vrsqrt.pop %v1277
    %v1289 = vmul.f32 %v1288, %v1277
    %v1290 = vmul.f32 %v1289, %v1288
    %v1291 = vmul.f32 0.5, %v1290
    %v1292 = vsub.f32 1.5, %v1291
    %v1293 = vmul.f32 %v1288, %v1292
    %vm1294 = vweird.f32 %v1277
    %vm1295 = vweird.f32 %v1288
    %vm1296 = vmor %vm1294, %vm1295
    %v1297 = vsel %vm1296, %v1288, %v1293
    %v1298 = vmul.f32 %v1264, %v1287
    %v1299 = vmul.f32 %v1265, %v1297
    %v1300 = vperm.slane %v790, 0
    %v1301 = vmul.f32 %v1298, %v1300
    %v1302 = vmul.f32 %v1299, %v1300
    %v1303 = vperm.slane %v791, 0
    %v1304 = vadd.f32 %v1301, %v1303
    %v1305 = vadd.f32 %v1302, %v1303
    %v1306 = vperm.slane %v792, 0
    %v1308 = vsel %vm125, %v1304, 0
    %v1311 = vsel %vm125, %v1305, 0
    %1313 = vmatpush.msra.mxu0 0.0
    %1314 = vmatpush.msra.mxu0 0.0
    %1315 = vmatpush.msra.mxu0 0.0
    %1316 = vmatpush.msra.mxu0 0.0
    %1317 = vmatpush.msra.mxu0 0.0
    %1318 = vmatpush.msra.mxu0 0.0
    %1319 = vmatpush.msra.mxu0 0.0
    %1320 = vmatpush.msra.mxu0 0.0
    %1321 = vmatpush.msra.mxu0 0.0
    %1322 = vmatpush.msra.mxu0 0.0
    %1323 = vmatpush.msra.mxu0 0.0
    %1324 = vmatpush.msra.mxu0 0.0
    %1325 = vmatpush.msra.mxu0 %v785
    %1326 = vmatpush.msra.mxu0 %v784
    %1327 = vmatpush.msra.mxu0 %v783
    %1328 = vmatpush.msra.mxu0 %v782
    %1329 = vmatmul.f32.gmra.mxu0 %v1308
    %v1330 = vpop.f32.mrf.mxu0
    %v1331 = vadd.f32 %v1306, %v1330
    %1332 = vmatmul.f32.gmra.mxu0 %v1311
    %v1333 = vpop.f32.mrf.mxu0
    %v1334 = vadd.f32 %v1306, %v1333
    %1335 = vdwg.mxu0
    %v1336 = vmax.f32 %v1331, 0.0
    %v1337 = vmax.f32 %v1334, 0.0
    %v1338 = vperm.slane %v793, 0
    %v1340 = vsel %vm676, %v1336, 0
    %v1343 = vsel %vm676, %v1337, 0
    %1345 = vmatpush.msra.mxu0 0.0
    %1346 = vmatpush.msra.mxu0 0.0
    %1347 = vmatpush.msra.mxu0 0.0
    %1348 = vmatpush.msra.mxu0 0.0
    %1349 = vmatpush.msra.mxu0 0.0
    %1350 = vmatpush.msra.mxu0 0.0
    %1351 = vmatpush.msra.mxu0 0.0
    %1352 = vmatpush.msra.mxu0 0.0
    %1353 = vmatpush.msra.mxu0 %v781
    %1354 = vmatpush.msra.mxu0 %v780
    %1355 = vmatpush.msra.mxu0 %v779
    %1356 = vmatpush.msra.mxu0 %v778
    %1357 = vmatpush.msra.mxu0 %v777
    %1358 = vmatpush.msra.mxu0 %v776
    %1359 = vmatpush.msra.mxu0 %v775
    %1360 = vmatpush.msra.mxu0 %v774
    %1361 = vmatmul.f32.gmra.mxu0 %v1340
    %v1362 = vpop.f32.mrf.mxu0
    %v1363 = vadd.f32 %v1338, %v1362
    %1364 = vmatmul.f32.gmra.mxu0 %v1343
    %v1365 = vpop.f32.mrf.mxu0
    %v1366 = vadd.f32 %v1338, %v1365
    %1367 = vdwg.mxu0
    %v1368 = vadd.f32 %v1363, %v1304
    %v1369 = vadd.f32 %v1366, %v1305
    %v1370 = vsel %vm125, %v1368, 0.0
    %1371 = vadd.xlane.f32.xlu0 %v1370
    %v1372 = vpop.xlane.xlu0 %1371
    %v1373 = vsel %vm125, %v1369, 0.0
    %1374 = vadd.xlane.f32.xlu0 %v1373
    %v1375 = vpop.xlane.xlu0 %1374
    %v1376 = vmul.f32 %v1372, %v598
    %v1377 = vmul.f32 %v1375, %v598
    %v1378 = vsub.f32 %v1368, %v1376
    %v1379 = vsub.f32 %v1369, %v1377
    %v1380 = vmul.f32 %v1378, %v1378
    %v1381 = vmul.f32 %v1379, %v1379
    %v1382 = vsel %vm125, %v1380, 0.0
    %1383 = vadd.xlane.f32.xlu0 %v1382
    %v1384 = vpop.xlane.xlu0 %1383
    %v1385 = vsel %vm125, %v1381, 0.0
    %1386 = vadd.xlane.f32.xlu0 %v1385
    %v1387 = vpop.xlane.xlu0 %1386
    %v1388 = vmul.f32 %v1384, %v598
    %v1389 = vmul.f32 %v1387, %v598
    %v1390 = vadd.f32 %v1388, 1e-06
    %v1391 = vadd.f32 %v1389, 1e-06
    %v1392 = vrsqrt.pop %v1390
    %v1393 = vmul.f32 %v1392, %v1390
    %v1394 = vmul.f32 %v1393, %v1392
    %v1395 = vmul.f32 0.5, %v1394
    %v1396 = vsub.f32 1.5, %v1395
    %v1397 = vmul.f32 %v1392, %v1396
    %vm1398 = vweird.f32 %v1390
    %vm1399 = vweird.f32 %v1392
    %vm1400 = vmor %vm1398, %vm1399
    %v1401 = vsel %vm1400, %v1392, %v1397
    %v1402 = vrsqrt.pop %v1391
    %v1403 = vmul.f32 %v1402, %v1391
    %v1404 = vmul.f32 %v1403, %v1402
    %v1405 = vmul.f32 0.5, %v1404
    %v1406 = vsub.f32 1.5, %v1405
    %v1407 = vmul.f32 %v1402, %v1406
    %vm1408 = vweird.f32 %v1391
    %vm1409 = vweird.f32 %v1402
    %vm1410 = vmor %vm1408, %vm1409
    %v1411 = vsel %vm1410, %v1402, %v1407
    %v1412 = vmul.f32 %v1378, %v1401
    %v1413 = vmul.f32 %v1379, %v1411
    %v1414 = vperm.slane %v794, 0
    %v1415 = vmul.f32 %v1412, %v1414
    %v1416 = vmul.f32 %v1413, %v1414
    %v1417 = vperm.slane %v795, 0
    %v1418 = vadd.f32 %v1415, %v1417
    %v1419 = vadd.f32 %v1416, %v1417
    %1420 = vst.msk [vmem:[#allocation2] sm:$0xff] %vm125, %v1418
    %1421 = vst.msk [vmem:[#allocation2 + $0x8] sm:$0xff] %vm125, %v1419
    // Predicated region
    $region14: #{encoder_forward.1} parent=1 // pred_check
      _
    $region15: #{encoder_forward.1} parent=1 // pred_check_branch
      %1423 = sbr.rel (0) target = $region17
    $region16: #{encoder_forward.1} parent=1 // pred_region
      %1425 = vsyncadd [#allocation3], 0
      %s1426 = sshll.u32 [#allocation2], 4
      %s1427 = int_to_ptr.vmem [resolvable:$true] %s1426
      %s1428 = sshll.u32 %s3, 4
      %s1429 = int_to_ptr.hbm [resolvable:$true] %s1428
      %1434 = dma.vmem_to_hbm [thread:$0]  %s1427, 256, %s1429, [#allocation3], 128, 128, 8
    $region17: #{encoder_forward.1} parent=1 // pred_fallthru
      _
    // Predicated region
    $region18: #{encoder_forward.1} parent=1 // pred_check
      _
    $region19: #{encoder_forward.1} parent=1 // pred_check_branch
      %1436 = sbr.rel (0) target = $region21
    $region20: #{encoder_forward.1} parent=1 // pred_region
      %1438 = dma.done [#allocation3], 256
    $region21: #{encoder_forward.1} parent=1 // pred_fallthru
      _
    %1439 = vsyncpa [#allocation3], 1

</llo_original>
